<compile_context>
chip_gen: v7x
topology: tpu7x:2x2x1
jax: 0.10.0
libtpu: 0.0.40
codegen_flags: <defaults>
</compile_context>

<pallas_src>
import jax
import jax.numpy as jnp
from jax.experimental import pallas as pl
from jax.experimental.pallas import tpu as pltpu


LANES = 128  # final logits padded to a full lane group for a dense store.


# ----------------------------- fused Pallas kernel ---------------------------

def _bi_classifier_kernel(a_in_ref, a_out_ref, x_ref, wg_ref, wm1_ref, wm2_ref,
                          bias_ref, o_ref, acc_ref):
    f32 = jnp.float32
    bf16 = jnp.bfloat16

    two_h = wg_ref.shape[1]          # 2 * H_GCN (concat width)
    h_gcn = two_h // 2
    h_mlp = wm1_ref.shape[1]

    k = pl.program_id(1)

    @pl.when(k == 0)
    def _():
        acc_ref[...] = jnp.zeros_like(acc_ref)

    # Fused X@W on the MXU: [x_in | x_out] @ blockdiag(Wg1, Wg2)
    #   -> columns [:H] = X_in @ Wg1, columns [H:] = X_out @ Wg2.
    xw = jnp.dot(x_ref[...], wg_ref[...], preferred_element_type=f32)   # (tk, 2H) f32

    # Lane masks (VPU selects, no XLU slicing) keep each adjacency applied only
    # to its own branch's columns; the concat lands directly in the accumulator.
    col = jax.lax.broadcasted_iota(jnp.int32, xw.shape, 1)
    xw_in = jnp.where(col < h_gcn, xw, 0.0).astype(bf16)
    xw_out = jnp.where(col >= h_gcn, xw, 0.0).astype(bf16)

    acc_ref[...] += (jnp.dot(a_in_ref[...], xw_in, preferred_element_type=f32)
                     + jnp.dot(a_out_ref[...], xw_out, preferred_element_type=f32))

    # Epilogue: bias + ReLU + MLP head, only after the K reduction is complete.
    @pl.when(k == pl.num_programs(1) - 1)
    def _():
        biases = bias_ref[...]                       # (4, 128) f32
        b_gcn = biases[0:1, :two_h]                  # [b_gcn1 | b_gcn2]
        b_m1 = biases[1:2, :h_mlp]
        b_m2 = biases[2:3, :]                        # zero-padded logits bias

        h_cat = jnp.maximum(acc_ref[...] + b_gcn, 0.0).astype(bf16)     # (tm, 2H)
        z = jnp.dot(h_cat, wm1_ref[...], preferred_element_type=f32)    # (tm, H_MLP)
        z = jnp.maximum(z + b_m1, 0.0).astype(bf16)
        logits = jnp.dot(z, wm2_ref[...], preferred_element_type=f32) + b_m2
        o_ref[...] = logits.astype(o_ref.dtype)      # lane-dense bf16 store


# ------------------------------ JAX wrappers ---------------------------------

def pack_params(params):
    """One-time host-side packing: block-diag GCN weight, padded W2, packed
    biases; all matmul weights pre-cast to bf16."""
    f_in, h_gcn = params["gcn1_w"].shape
    two_h = 2 * h_gcn
    h_mlp = params["mlp_w1"].shape[1]
    c = params["mlp_w2"].shape[1]

    wg_bd = jnp.zeros((2 * f_in, two_h), jnp.float32)
    wg_bd = wg_bd.at[:f_in, :h_gcn].set(params["gcn1_w"])
    wg_bd = wg_bd.at[f_in:, h_gcn:].set(params["gcn2_w"])

    w2_pad = jnp.zeros((h_mlp, LANES), jnp.float32)
    w2_pad = w2_pad.at[:, :c].set(params["mlp_w2"])

    bias = jnp.zeros((4, LANES), jnp.float32)
    bias = bias.at[0, :h_gcn].set(params["gcn1_b"].reshape(-1))
    bias = bias.at[0, h_gcn:two_h].set(params["gcn2_b"].reshape(-1))
    bias = bias.at[1, :h_mlp].set(params["mlp_b1"].reshape(-1))
    bias = bias.at[2, :c].set(params["mlp_b2"].reshape(-1))   # lanes [c:] stay 0

    return {
        "wg_blockdiag": wg_bd.astype(jnp.bfloat16),
        "mlp_w1": params["mlp_w1"].astype(jnp.bfloat16),
        "mlp_w2_pad": w2_pad.astype(jnp.bfloat16),
        "bias_pack": bias,
        "num_classes": c,
    }


def bi_classifier_forward(packed, in_blocks, in_features, out_blocks,
                          out_features, *, tm=512, tk=512):
    """Mirrors BiClassifier.forward (both GCN branches present)."""
    n = in_blocks.shape[0]
    f = in_features.shape[1]
    two_f = 2 * f
    two_h = packed["wg_blockdiag"].shape[1]
    h_mlp = packed["mlp_w1"].shape[1]
    c = packed["num_classes"]

    tm = min(tm, n)
    tk = min(tk, n)
    if n % tm or n % tk:
        raise ValueError(f"node count {n} must be divisible by tiles ({tm}, {tk})")
    if tm % 16 or (tk % 128 and tk != n):
        raise ValueError("tiles must respect the bf16 (16, 128) layout")

    bf16 = jnp.bfloat16
    # Cast the dominant HBM streams to bf16 BEFORE the kernel: halves the DMA
    # and removes in-kernel VPU casts.  f32 accumulation preserved in-kernel.
    a_in = in_blocks.astype(bf16)
    a_out = out_blocks.astype(bf16)
    x_cat = jnp.concatenate([in_features, out_features], axis=1).astype(bf16)

    grid = (n // tm, n // tk)   # reduction axis (k) last

    weights = (packed["wg_blockdiag"], packed["mlp_w1"], packed["mlp_w2_pad"],
               packed["bias_pack"])
    weight_bytes = sum(int(w.size) * w.dtype.itemsize for w in weights)

    # Explicit VMEM budget (double-buffered tiles) -- sized against v7x's 64 MiB.
    vmem_need = (2 * 2 * tm * tk * 2       # A_in + A_out tiles, 2 bufs, bf16
                 + 2 * tk * two_f * 2      # x_cat tile, 2 bufs, bf16
                 + 2 * tm * LANES * 2      # output tile, 2 bufs, bf16
                 + tm * two_h * 4          # f32 accumulator scratch
                 + weight_bytes)
    vmem_limit = int(min(max(2 * vmem_need, 32 * 1024 * 1024), 48 * 1024 * 1024))

    flops = (grid[0] * n * two_f * two_h * 2     # fused X@W (recomputed per row tile)
             + 2 * n * n * two_h * 2             # the two A @ XW reductions
             + n * two_h * h_mlp * 2             # MLP layer 1
             + n * h_mlp * LANES * 2)            # padded MLP layer 2
    bytes_accessed = (2 * n * n * 2              # bf16 adjacencies, read once
                      + grid[0] * n * two_f * 2  # x_cat re-read per row tile
                      + weight_bytes
                      + n * LANES * 2)           # bf16 padded logits writeback

    out_pad = pl.pallas_call(
        _bi_classifier_kernel,
        out_shape=jax.ShapeDtypeStruct((n, LANES), jnp.bfloat16),
        grid_spec=pltpu.PrefetchScalarGridSpec(
            num_scalar_prefetch=0,
            grid=grid,
            in_specs=[
                pl.BlockSpec((tm, tk), lambda i, k: (i, k)),       # A_in tile
                pl.BlockSpec((tm, tk), lambda i, k: (i, k)),       # A_out tile
                pl.BlockSpec((tk, two_f), lambda i, k: (k, 0)),    # [x_in | x_out] rows
                pl.BlockSpec((2 * f, two_h), lambda i, k: (0, 0)),  # blockdiag(Wg1,Wg2)
                pl.BlockSpec((two_h, h_mlp), lambda i, k: (0, 0)),  # MLP W1 (whole)
                pl.BlockSpec((h_mlp, LANES), lambda i, k: (0, 0)),  # MLP W2 (padded)
                pl.BlockSpec((4, LANES), lambda i, k: (0, 0)),      # packed biases
            ],
            out_specs=pl.BlockSpec((tm, LANES), lambda i, k: (i, 0)),
            scratch_shapes=[pltpu.VMEM((tm, two_h), jnp.float32)],
        ),
        compiler_params=pltpu.CompilerParams(
            dimension_semantics=("parallel", "arbitrary"),
            vmem_limit_bytes=vmem_limit,
        ),
        cost_estimate=pl.CostEstimate(flops=flops, transcendentals=0,
                                      bytes_accessed=bytes_accessed),
    )(a_in, a_out, x_cat, *weights)

    return out_pad[:, :c].astype(jnp.float32)


# Pure-JAX f32 reference for a correctness sanity check.
def _reference(params, in_blocks, in_features, out_blocks, out_features):
    h = jnp.maximum(in_blocks @ in_features @ params["gcn1_w"]
                    + params["gcn1_b"], 0.0)
    rh = jnp.maximum(out_blocks @ out_features @ params["gcn2_w"]
                     + params["gcn2_b"], 0.0)
    h = jnp.concatenate((h, rh), axis=1)
    z = jnp.maximum(h @ params["mlp_w1"] + params["mlp_b1"], 0.0)
    return z @ params["mlp_w2"] + params["mlp_b2"]


# --------------------------------- main ---------------------------------------

if __name__ == "__main__":
    # Small demo sizes; for realistic graphs use N >= a few thousand nodes and
    # 512-1024 tiles (defaults of bi_classifier_forward) and profile with xprof.
    N = 256       # nodes (divisible by the demo tiles)
    F_IN = 32     # input feature dim
    H_GCN = 16    # per-branch GCN hidden dim (concat -> 32)
    H_MLP = 32    # MLP hidden dim
    C = 2         # binary classifier logits
    TM = TK = 128  # demo tiles -> grid (2, 2): exercises the k-reduction + epilogue

    key = jax.random.PRNGKey(0)
    keys = jax.random.split(key, 10)

    # Dense, row-normalized "blocks" (adjacency matrices).
    a_in_raw = (jax.random.uniform(keys[0], (N, N)) > 0.5).astype(jnp.float32)
    a_in_raw = a_in_raw + jnp.eye(N, dtype=jnp.float32)
    in_blocks = a_in_raw / jnp.sum(a_in_raw, axis=1, keepdims=True)

    a_out_raw = (jax.random.uniform(keys[1], (N, N)) > 0.5).astype(jnp.float32)
    a_out_raw = a_out_raw + jnp.eye(N, dtype=jnp.float32)
    out_blocks = a_out_raw / jnp.sum(a_out_raw, axis=1, keepdims=True)

    in_features = jax.random.normal(keys[2], (N, F_IN), dtype=jnp.float32)
    out_features = jax.random.normal(keys[3], (N, F_IN), dtype=jnp.float32)

    # Deterministic parameter init (synthetic; no checkpoint load).
    params = {
        "gcn1_w": jax.random.normal(keys[4], (F_IN, H_GCN), jnp.float32) * 0.1,
        "gcn1_b": jnp.zeros((1, H_GCN), jnp.float32),
        "gcn2_w": jax.random.normal(keys[5], (F_IN, H_GCN), jnp.float32) * 0.1,
        "gcn2_b": jnp.zeros((1, H_GCN), jnp.float32),
        "mlp_w1": jax.random.normal(keys[6], (2 * H_GCN, H_MLP),
                                    jnp.float32) * 0.1,
        "mlp_b1": jnp.zeros((1, H_MLP), jnp.float32),
        "mlp_w2": jax.random.normal(keys[7], (H_MLP, C), jnp.float32) * 0.1,
        "mlp_b2": jnp.zeros((1, C), jnp.float32),
    }

    packed = pack_params(params)

    out = bi_classifier_forward(packed, in_blocks, in_features,
                                out_blocks, out_features, tm=TM, tk=TK)
    out = jax.block_until_ready(out)

    ref = _reference(params, in_blocks, in_features, out_blocks, out_features)
    assert out.shape == (N, C)
    # bf16 matmul operands + bf16 output (f32 accumulation) -> relaxed tolerance.
    assert jnp.allclose(out, ref, atol=2e-2, rtol=2e-2), \
        float(jnp.max(jnp.abs(out - ref)))

    print("KERNEL_OK")
</pallas_src>

<mosaic_0001>
module attributes {stable_mosaic.version = 11 : i64} {
  func.func @_bi_classifier_kernel(%arg0: i32, %arg1: i32, %arg2: memref<128x128xbf16, #tpu.memory_space<vmem>>, %arg3: memref<128x128xbf16, #tpu.memory_space<vmem>>, %arg4: memref<128x64xbf16, #tpu.memory_space<vmem>>, %arg5: memref<64x32xbf16, #tpu.memory_space<vmem>>, %arg6: memref<32x32xbf16, #tpu.memory_space<vmem>>, %arg7: memref<32x128xbf16, #tpu.memory_space<vmem>>, %arg8: memref<4x128xf32, #tpu.memory_space<vmem>>, %arg9: memref<128x128xbf16, #tpu.memory_space<vmem>>, %arg10: memref<128x32xf32, #tpu.memory_space<vmem>>) attributes {dimension_semantics = [#tpu.dimension_semantics<parallel>, #tpu.dimension_semantics<arbitrary>], iteration_bounds = array<i64: 2, 2>, scalar_prefetch = 0 : i64, scratch_operands = 1 : i64, tpu.core_type = #tpu.core_type<tc>, window_params = [{transform_indices = @transform_0, window_bounds = array<i64: 128, 128>}, {transform_indices = @transform_1, window_bounds = array<i64: 128, 128>}, {transform_indices = @transform_2, window_bounds = array<i64: 128, 64>}, {pipeline_mode = #tpu.pipeline_mode<synchronous>, transform_indices = @transform_3, window_bounds = array<i64: 64, 32>}, {pipeline_mode = #tpu.pipeline_mode<synchronous>, transform_indices = @transform_4, window_bounds = array<i64: 32, 32>}, {pipeline_mode = #tpu.pipeline_mode<synchronous>, transform_indices = @transform_5, window_bounds = array<i64: 32, 128>}, {pipeline_mode = #tpu.pipeline_mode<synchronous>, transform_indices = @transform_6, window_bounds = array<i64: 4, 128>}, {transform_indices = @transform_7, window_bounds = array<i64: 128, 128>}]} {
    %c0_i32 = arith.constant 0 : i32
    %0 = arith.cmpi eq, %arg1, %c0_i32 : i32
    %1 = arith.extui %0 : i1 to i32
    %c0_i32_0 = arith.constant 0 : i32
    %2 = arith.cmpi ne, %1, %c0_i32_0 : i32
    scf.if %2 {
      %cst_18 = arith.constant 0.000000e+00 : f32
      %28 = vector.broadcast %cst_18 : f32 to vector<128x32xf32>
      %c0_19 = arith.constant 0 : index
      %c0_20 = arith.constant 0 : index
      %29 = vector.load %arg10[%c0_19, %c0_20] : memref<128x32xf32, #tpu.memory_space<vmem>>, vector<128x32xf32>
      tpu.vector_store %arg10[%c0_19, %c0_20], %28 {strides = array<i32>} : memref<128x32xf32, #tpu.memory_space<vmem>>, vector<128x32xf32>,
    } else {
    }
    %c0 = arith.constant 0 : index
    %c0_1 = arith.constant 0 : index
    %3 = vector.load %arg4[%c0, %c0_1] : memref<128x64xbf16, #tpu.memory_space<vmem>>, vector<128x64xbf16>
    %c0_2 = arith.constant 0 : index
    %c0_3 = arith.constant 0 : index
    %4 = vector.load %arg5[%c0_2, %c0_3] : memref<64x32xbf16, #tpu.memory_space<vmem>>, vector<64x32xbf16>
    %cst = arith.constant dense<0.000000e+00> : vector<128x32xf32>
    %5 = tpu.matmul %3, %4, %cst {dimension_numbers = #tpu.dot_dimension_numbers<[1], [0], [0], [1], [0, 0, 1, 1], [], []>} : vector<128x64xbf16>, vector<64x32xbf16>, vector<128x32xf32> -> vector<128x32xf32>
    %6 = tpu.iota {dimensions = array<i32: 1>} : vector<128x32xi32>
    %c16_i32 = arith.constant 16 : i32
    %7 = vector.broadcast %c16_i32 : i32 to vector<128x32xi32>
    %8 = arith.cmpi slt, %6, %7 : vector<128x32xi32>
    %cst_4 = arith.constant 0.000000e+00 : f32
    %9 = vector.broadcast %cst_4 : f32 to vector<128x32xf32>
    %10 = arith.select %8, %5, %9 : vector<128x32xi1>, vector<128x32xf32>
    %11 = arith.truncf %10 : vector<128x32xf32> to vector<128x32xbf16>
    %c16_i32_5 = arith.constant 16 : i32
    %12 = vector.broadcast %c16_i32_5 : i32 to vector<128x32xi32>
    %13 = arith.cmpi sge, %6, %12 : vector<128x32xi32>
    %cst_6 = arith.constant 0.000000e+00 : f32
    %14 = vector.broadcast %cst_6 : f32 to vector<128x32xf32>
    %15 = arith.select %13, %5, %14 : vector<128x32xi1>, vector<128x32xf32>
    %16 = arith.truncf %15 : vector<128x32xf32> to vector<128x32xbf16>
    %c0_7 = arith.constant 0 : index
    %c0_8 = arith.constant 0 : index
    %17 = vector.load %arg10[%c0_7, %c0_8] : memref<128x32xf32, #tpu.memory_space<vmem>>, vector<128x32xf32>
    %c0_9 = arith.constant 0 : index
    %c0_10 = arith.constant 0 : index
    %18 = vector.load %arg2[%c0_9, %c0_10] : memref<128x128xbf16, #tpu.memory_space<vmem>>, vector<128x128xbf16>
    %cst_11 = arith.constant dense<0.000000e+00> : vector<128x32xf32>
    %19 = tpu.matmul %18, %11, %cst_11 {dimension_numbers = #tpu.dot_dimension_numbers<[1], [0], [0], [1], [0, 0, 1, 1], [], []>} : vector<128x128xbf16>, vector<128x32xbf16>, vector<128x32xf32> -> vector<128x32xf32>
    %c0_12 = arith.constant 0 : index
    %c0_13 = arith.constant 0 : index
    %20 = vector.load %arg3[%c0_12, %c0_13] : memref<128x128xbf16, #tpu.memory_space<vmem>>, vector<128x128xbf16>
    %cst_14 = arith.constant dense<0.000000e+00> : vector<128x32xf32>
    %21 = tpu.matmul %20, %16, %cst_14 {dimension_numbers = #tpu.dot_dimension_numbers<[1], [0], [0], [1], [0, 0, 1, 1], [], []>} : vector<128x128xbf16>, vector<128x32xbf16>, vector<128x32xf32> -> vector<128x32xf32>
    %22 = arith.addf %19, %21 : vector<128x32xf32>
    %23 = arith.addf %17, %22 : vector<128x32xf32>
    %c0_15 = arith.constant 0 : index
    %c0_16 = arith.constant 0 : index
    %24 = vector.load %arg10[%c0_15, %c0_16] : memref<128x32xf32, #tpu.memory_space<vmem>>, vector<128x32xf32>
    tpu.vector_store %arg10[%c0_15, %c0_16], %23 {strides = array<i32>} : memref<128x32xf32, #tpu.memory_space<vmem>>, vector<128x32xf32>,
    %c1_i32 = arith.constant 1 : i32
    %25 = arith.cmpi eq, %arg1, %c1_i32 : i32
    %26 = arith.extui %25 : i1 to i32
    %c0_i32_17 = arith.constant 0 : i32
    %27 = arith.cmpi ne, %26, %c0_i32_17 : i32
    scf.if %27 {
      %c0_18 = arith.constant 0 : index
      %c0_19 = arith.constant 0 : index
      %28 = vector.load %arg8[%c0_18, %c0_19] : memref<4x128xf32, #tpu.memory_space<vmem>>, vector<4x128xf32>
      %29 = vector.extract_strided_slice %28 {offsets = [0, 0], sizes = [1, 32], strides = [1, 1]} : vector<4x128xf32> to vector<1x32xf32>
      %30 = vector.extract_strided_slice %28 {offsets = [1, 0], sizes = [1, 32], strides = [1, 1]} : vector<4x128xf32> to vector<1x32xf32>
      %31 = vector.extract_strided_slice %28 {offsets = [2, 0], sizes = [1, 128], strides = [1, 1]} : vector<4x128xf32> to vector<1x128xf32>
      %c0_20 = arith.constant 0 : index
      %c0_21 = arith.constant 0 : index
      %32 = vector.load %arg10[%c0_20, %c0_21] : memref<128x32xf32, #tpu.memory_space<vmem>>, vector<128x32xf32>
      %33 = vector.broadcast %29 : vector<1x32xf32> to vector<128x32xf32>
      %34 = arith.addf %32, %33 : vector<128x32xf32>
      %cst_22 = arith.constant 0.000000e+00 : f32
      %35 = vector.broadcast %cst_22 : f32 to vector<128x32xf32>
      %36 = arith.maximumf %34, %35 : vector<128x32xf32>
      %37 = arith.truncf %36 : vector<128x32xf32> to vector<128x32xbf16>
      %c0_23 = arith.constant 0 : index
      %c0_24 = arith.constant 0 : index
      %38 = vector.load %arg6[%c0_23, %c0_24] : memref<32x32xbf16, #tpu.memory_space<vmem>>, vector<32x32xbf16>
      %cst_25 = arith.constant dense<0.000000e+00> : vector<128x32xf32>
      %39 = tpu.matmul %37, %38, %cst_25 {dimension_numbers = #tpu.dot_dimension_numbers<[1], [0], [0], [1], [0, 0, 1, 1], [], []>} : vector<128x32xbf16>, vector<32x32xbf16>, vector<128x32xf32> -> vector<128x32xf32>
      %40 = vector.broadcast %30 : vector<1x32xf32> to vector<128x32xf32>
      %41 = arith.addf %39, %40 : vector<128x32xf32>
      %cst_26 = arith.constant 0.000000e+00 : f32
      %42 = vector.broadcast %cst_26 : f32 to vector<128x32xf32>
      %43 = arith.maximumf %41, %42 : vector<128x32xf32>
      %44 = arith.truncf %43 : vector<128x32xf32> to vector<128x32xbf16>
      %c0_27 = arith.constant 0 : index
      %c0_28 = arith.constant 0 : index
      %45 = vector.load %arg7[%c0_27, %c0_28] : memref<32x128xbf16, #tpu.memory_space<vmem>>, vector<32x128xbf16>
      %cst_29 = arith.constant dense<0.000000e+00> : vector<128x128xf32>
      %46 = tpu.matmul %44, %45, %cst_29 {dimension_numbers = #tpu.dot_dimension_numbers<[1], [0], [0], [1], [0, 0, 1, 1], [], []>} : vector<128x32xbf16>, vector<32x128xbf16>, vector<128x128xf32> -> vector<128x128xf32>
      %47 = vector.broadcast %31 : vector<1x128xf32> to vector<128x128xf32>
      %48 = arith.addf %46, %47 : vector<128x128xf32>
      %49 = arith.truncf %48 : vector<128x128xf32> to vector<128x128xbf16>
      %c0_30 = arith.constant 0 : index
      %c0_31 = arith.constant 0 : index
      %50 = vector.load %arg9[%c0_30, %c0_31] : memref<128x128xbf16, #tpu.memory_space<vmem>>, vector<128x128xbf16>
      tpu.vector_store %arg9[%c0_30, %c0_31], %49 {strides = array<i32>} : memref<128x128xbf16, #tpu.memory_space<vmem>>, vector<128x128xbf16>,
    } else {
    }
    return
  }
  func.func @transform_0(%arg0: i32, %arg1: i32) -> (i32, i32) {
    %c0_i32 = arith.constant 0 : i32
    return %arg0, %arg1 : i32, i32
  }
  func.func @transform_1(%arg0: i32, %arg1: i32) -> (i32, i32) {
    %c0_i32 = arith.constant 0 : i32
    return %arg0, %arg1 : i32, i32
  }
  func.func @transform_2(%arg0: i32, %arg1: i32) -> (i32, i32) {
    %c0_i32 = arith.constant 0 : i32
    %c0_i32_0 = arith.constant 0 : i32
    return %arg1, %c0_i32 : i32, i32
  }
  func.func @transform_3(%arg0: i32, %arg1: i32) -> (i32, i32) {
    %c0_i32 = arith.constant 0 : i32
    %c0_i32_0 = arith.constant 0 : i32
    %c0_i32_1 = arith.constant 0 : i32
    return %c0_i32, %c0_i32_0 : i32, i32
  }
  func.func @transform_4(%arg0: i32, %arg1: i32) -> (i32, i32) {
    %c0_i32 = arith.constant 0 : i32
    %c0_i32_0 = arith.constant 0 : i32
    %c0_i32_1 = arith.constant 0 : i32
    return %c0_i32, %c0_i32_0 : i32, i32
  }
  func.func @transform_5(%arg0: i32, %arg1: i32) -> (i32, i32) {
    %c0_i32 = arith.constant 0 : i32
    %c0_i32_0 = arith.constant 0 : i32
    %c0_i32_1 = arith.constant 0 : i32
    return %c0_i32, %c0_i32_0 : i32, i32
  }
  func.func @transform_6(%arg0: i32, %arg1: i32) -> (i32, i32) {
    %c0_i32 = arith.constant 0 : i32
    %c0_i32_0 = arith.constant 0 : i32
    %c0_i32_1 = arith.constant 0 : i32
    return %c0_i32, %c0_i32_0 : i32, i32
  }
  func.func @transform_7(%arg0: i32, %arg1: i32) -> (i32, i32) {
    %c0_i32 = arith.constant 0 : i32
    %c0_i32_0 = arith.constant 0 : i32
    return %arg0, %c0_i32 : i32, i32
  }
}

</mosaic_0001>

<llo_original>
// kernel: tpu_custom_call.1
$region0: #{tpu_custom_call.1}
  #allocation0 [shape = 'u32[]', space=smem, size = 0x4, offset = 0x4, fixed_abs, tag = 'smem constant byte address 0x4 - core index']
  #allocation1 [shape = 'u32[144,128]{1,0:T(1,128)}', space=vmem, size = 0x12000, scoped, tag = 'internal scratch']
  #allocation2 [shape = 'f32[128,32]{1,0:T(8,128)}', space=vmem, size = 0x10000, scoped, tag = 'scratch operand']
  %s0 = inlined_call_operand.hbm [shape: bf16[256,256], index: 0, kind: input, shape index: {}]
  %s1 = inlined_call_operand.hbm [shape: bf16[256,256], index: 1, kind: input, shape index: {}]
  %s2 = inlined_call_operand.vmem [shape: bf16[256,64], index: 2, kind: input, shape index: {}]
  %s3 = inlined_call_operand.vmem [shape: bf16[64,32], index: 3, kind: input, shape index: {}]
  %s4 = inlined_call_operand.vmem [shape: bf16[32,32], index: 4, kind: input, shape index: {}]
  %s5 = inlined_call_operand.vmem [shape: bf16[32,128], index: 5, kind: input, shape index: {}]
  %s6 = inlined_call_operand.vmem [shape: f32[4,128], index: 6, kind: input, shape index: {}]
  %s7 = inlined_call_operand.hbm [shape: bf16[256,128], index: 7, kind: output, shape index: {}]
  %s8 = sld [smem:[#allocation0]]
  $region77: #{tpu_custom_call.1} parent=0
    _
  %s10 = ssub.s32 1, %s8
  %s11 = scalar_select 0, %s10, %s8
  $region1: #{tpu_custom_call.1} parent=0
    #allocation3 [shape = 'u8[65536]{0}', space=vmem, size = 0x10000, scoped, tag = 'input window, operand 0']
    #allocation4 [shape = 's32[2]{0}', space=sflag, size = 0x8, scoped, tag = 'scoped memory for tpu_custom_call.1']
    #allocation5 [shape = 's32[2]{0}', space=sflag, size = 0x8, scoped, tag = 'scoped memory for tpu_custom_call.1']
    #allocation6 [shape = 'u8[65536]{0}', space=vmem, size = 0x10000, scoped, tag = 'input window, operand 1']
    #allocation7 [shape = 's32[2]{0}', space=sflag, size = 0x8, scoped, tag = 'scoped memory for tpu_custom_call.1']
    #allocation8 [shape = 'u8[65536]{0}', space=vmem, size = 0x10000, scoped, tag = 'output window, operand 0']
    %12 = vsyncpa [#allocation4], 0
    %s13 = scalar_lea.sflag [#allocation4], 1
    %14 = vsyncpa %s13, 0
    %15 = vsyncpa [#allocation7], 0
    %s16 = scalar_lea.sflag [#allocation7], 1
    %17 = vsyncpa %s16, 0
    %18 = vsyncpa [#allocation5], 0
    %s19 = scalar_lea.sflag [#allocation5], 1
    %20 = vsyncpa %s19, 0
    loop: start=0, step=1, limit=6
    $region2: #{tpu_custom_call.1} parent=1 // loop_pre_header
      _
    $region3: #{tpu_custom_call.1} parent=1 // loop_header
      %s22 = sphi 0, %s26
      %p23 = scmp.ge.s32.totalorder %s22, 6
      %s29 = sphi 0, %s41
      %s30 = sphi 0, %s37
      %s31 = sphi 0, %s29
      %s32 = sphi 0, %s30
      %s33 = sphi 0, %s31
      %s34 = sphi 0, %s32
      %s46 = sphi 0, %s48
      %s49 = sphi 0, %s46
      %s50 = sphi 0, %s49
      %s66 = sphi 0, %s50
      %s74 = sphi 0, %s76
      %s77 = sphi 0, %s74
      %s78 = sphi 0, %s77
      %s94 = sphi 0, %s78
      %s100 = sphi 0, %s102
      %s103 = sphi 0, %s100
      %s104 = sphi 0, %s103
      %s120 = sphi 0, %s104
      %s124 = sphi 0, %s124
      %s126 = sphi 0, %s124
      %s127 = sphi 0, %s126
      %s141 = sphi 0, %s127
      %s145 = sphi 0, %s145
      %s147 = sphi 0, %s145
      %s148 = sphi 0, %s147
      %s162 = sphi 0, %s148
      %s166 = sphi 0, %s166
      %s168 = sphi 0, %s166
      %s169 = sphi 0, %s168
      %s183 = sphi 0, %s169
      %s187 = sphi 0, %s187
      %s189 = sphi 0, %s187
      %s190 = sphi 0, %s189
      %s204 = sphi 0, %s190
      %s210 = sphi 0, %s212
      %s213 = sphi 0, %s210
      %s214 = sphi 0, %s213
      %s230 = sphi 0, %s214
    $region4: #{tpu_custom_call.1} parent=1 // loop_header_branch
      %25 = sbr.rel (%p23) target = $region8
    $region5: #{tpu_custom_call.1} parent=1 // loop_body
      %s27 = ssub.s32 %s22, 1
      %s28 = ssub.s32 %s22, 2
      %s35 = sadd.s32 1, %s30
      %p36 = scmp.ge.s32.totalorder %s35, 2
      %s37 = scalar_select %p36, 0, %s35
      %s38 = sadd.s32 1, %s29
      %s39 = scalar_select %p36, %s38, %s29
      %p40 = scmp.ge.s32.totalorder %s39, 2
      %s41 = scalar_select %p40, 0, %s39
      %s42 = ssub.s32 %s29, %s41
      %s43 = ssub.s32 %s30, %s37
      %s44 = sor.u32 %s42, %s43
      %p45 = scmp.eq.s32.totalorder %s44, 0
      %s47 = sadd.s32 %s46, 1
      %s48 = scalar_select %p45, %s46, %s47
      %p51 = pneg %p45
      %p52 = scmp.eq.s32.totalorder %s22, 3
      %p53 = por %p51, %p52
      %p54 = scmp.ne.s32.totalorder %s46, %s49
      %p55 = scmp.eq.s32.totalorder %s22, 0
      %p56 = por %p54, %p55
      %p57 = scmp.ne.s32.totalorder %s46, %s49
      %p58 = scmp.eq.s32.totalorder %s27, 3
      %p59 = por %p57, %p58
      %p60 = scmp.ne.s32.totalorder %s49, %s50
      %p61 = scmp.eq.s32.totalorder %s27, 0
      %p62 = por %p60, %p61
      %p63 = scmp.ne.s32.totalorder %s49, %s50
      %p64 = scmp.eq.s32.totalorder %s28, 3
      %p65 = por %p63, %p64
      %p67 = scmp.ne.s32.totalorder %s50, %s66
      %p68 = scmp.eq.s32.totalorder %s28, 0
      %p69 = por %p67, %p68
      %s70 = ssub.s32 %s29, %s41
      %s71 = ssub.s32 %s30, %s37
      %s72 = sor.u32 %s70, %s71
      %p73 = scmp.eq.s32.totalorder %s72, 0
      %s75 = sadd.s32 %s74, 1
      %s76 = scalar_select %p73, %s74, %s75
      %p79 = pneg %p73
      %p80 = scmp.eq.s32.totalorder %s22, 3
      %p81 = por %p79, %p80
      %p82 = scmp.ne.s32.totalorder %s74, %s77
      %p83 = scmp.eq.s32.totalorder %s22, 0
      %p84 = por %p82, %p83
      %p85 = scmp.ne.s32.totalorder %s74, %s77
      %p86 = scmp.eq.s32.totalorder %s27, 3
      %p87 = por %p85, %p86
      %p88 = scmp.ne.s32.totalorder %s77, %s78
      %p89 = scmp.eq.s32.totalorder %s27, 0
      %p90 = por %p88, %p89
      %p91 = scmp.ne.s32.totalorder %s77, %s78
      %p92 = scmp.eq.s32.totalorder %s28, 3
      %p93 = por %p91, %p92
      %p95 = scmp.ne.s32.totalorder %s78, %s94
      %p96 = scmp.eq.s32.totalorder %s28, 0
      %p97 = por %p95, %p96
      %s98 = ssub.s32 %s30, %s37
      %p99 = scmp.eq.s32.totalorder %s98, 0
      %s101 = sadd.s32 %s100, 1
      %s102 = scalar_select %p99, %s100, %s101
      %p105 = pneg %p99
      %p106 = scmp.eq.s32.totalorder %s22, 3
      %p107 = por %p105, %p106
      %p108 = scmp.ne.s32.totalorder %s100, %s103
      %p109 = scmp.eq.s32.totalorder %s22, 0
      %p110 = por %p108, %p109
      %p111 = scmp.ne.s32.totalorder %s100, %s103
      %p112 = scmp.eq.s32.totalorder %s27, 3
      %p113 = por %p111, %p112
      %p114 = scmp.ne.s32.totalorder %s103, %s104
      %p115 = scmp.eq.s32.totalorder %s27, 0
      %p116 = por %p114, %p115
      %p117 = scmp.ne.s32.totalorder %s103, %s104
      %p118 = scmp.eq.s32.totalorder %s28, 3
      %p119 = por %p117, %p118
      %p121 = scmp.ne.s32.totalorder %s104, %s120
      %p122 = scmp.eq.s32.totalorder %s28, 0
      %p123 = por %p121, %p122
      %s125 = sadd.s32 %s124, 1
      %p128 = scmp.eq.s32.totalorder %s22, 3
      %p129 = scmp.ne.s32.totalorder %s124, %s126
      %p130 = scmp.eq.s32.totalorder %s22, 0
      %p131 = por %p129, %p130
      %p132 = scmp.ne.s32.totalorder %s124, %s126
      %p133 = scmp.eq.s32.totalorder %s27, 3
      %p134 = por %p132, %p133
      %p135 = scmp.ne.s32.totalorder %s126, %s127
      %p136 = scmp.eq.s32.totalorder %s27, 0
      %p137 = por %p135, %p136
      %p138 = scmp.ne.s32.totalorder %s126, %s127
      %p139 = scmp.eq.s32.totalorder %s28, 3
      %p140 = por %p138, %p139
      %p142 = scmp.ne.s32.totalorder %s127, %s141
      %p143 = scmp.eq.s32.totalorder %s28, 0
      %p144 = por %p142, %p143
      %s146 = sadd.s32 %s145, 1
      %p149 = scmp.eq.s32.totalorder %s22, 3
      %p150 = scmp.ne.s32.totalorder %s145, %s147
      %p151 = scmp.eq.s32.totalorder %s22, 0
      %p152 = por %p150, %p151
      %p153 = scmp.ne.s32.totalorder %s145, %s147
      %p154 = scmp.eq.s32.totalorder %s27, 3
      %p155 = por %p153, %p154
      %p156 = scmp.ne.s32.totalorder %s147, %s148
      %p157 = scmp.eq.s32.totalorder %s27, 0
      %p158 = por %p156, %p157
      %p159 = scmp.ne.s32.totalorder %s147, %s148
      %p160 = scmp.eq.s32.totalorder %s28, 3
      %p161 = por %p159, %p160
      %p163 = scmp.ne.s32.totalorder %s148, %s162
      %p164 = scmp.eq.s32.totalorder %s28, 0
      %p165 = por %p163, %p164
      %s167 = sadd.s32 %s166, 1
      %p170 = scmp.eq.s32.totalorder %s22, 3
      %p171 = scmp.ne.s32.totalorder %s166, %s168
      %p172 = scmp.eq.s32.totalorder %s22, 0
      %p173 = por %p171, %p172
      %p174 = scmp.ne.s32.totalorder %s166, %s168
      %p175 = scmp.eq.s32.totalorder %s27, 3
      %p176 = por %p174, %p175
      %p177 = scmp.ne.s32.totalorder %s168, %s169
      %p178 = scmp.eq.s32.totalorder %s27, 0
      %p179 = por %p177, %p178
      %p180 = scmp.ne.s32.totalorder %s168, %s169
      %p181 = scmp.eq.s32.totalorder %s28, 3
      %p182 = por %p180, %p181
      %p184 = scmp.ne.s32.totalorder %s169, %s183
      %p185 = scmp.eq.s32.totalorder %s28, 0
      %p186 = por %p184, %p185
      %s188 = sadd.s32 %s187, 1
      %p191 = scmp.eq.s32.totalorder %s22, 3
      %p192 = scmp.ne.s32.totalorder %s187, %s189
      %p193 = scmp.eq.s32.totalorder %s22, 0
      %p194 = por %p192, %p193
      %p195 = scmp.ne.s32.totalorder %s187, %s189
      %p196 = scmp.eq.s32.totalorder %s27, 3
      %p197 = por %p195, %p196
      %p198 = scmp.ne.s32.totalorder %s189, %s190
      %p199 = scmp.eq.s32.totalorder %s27, 0
      %p200 = por %p198, %p199
      %p201 = scmp.ne.s32.totalorder %s189, %s190
      %p202 = scmp.eq.s32.totalorder %s28, 3
      %p203 = por %p201, %p202
      %p205 = scmp.ne.s32.totalorder %s190, %s204
      %p206 = scmp.eq.s32.totalorder %s28, 0
      %p207 = por %p205, %p206
      %s208 = ssub.s32 %s29, %s41
      %p209 = scmp.eq.s32.totalorder %s208, 0
      %s211 = sadd.s32 %s210, 1
      %s212 = scalar_select %p209, %s210, %s211
      %p215 = pneg %p209
      %p216 = scmp.eq.s32.totalorder %s22, 3
      %p217 = por %p215, %p216
      %p218 = scmp.ne.s32.totalorder %s210, %s213
      %p219 = scmp.eq.s32.totalorder %s22, 0
      %p220 = por %p218, %p219
      %p221 = scmp.ne.s32.totalorder %s210, %s213
      %p222 = scmp.eq.s32.totalorder %s27, 3
      %p223 = por %p221, %p222
      %p224 = scmp.ne.s32.totalorder %s213, %s214
      %p225 = scmp.eq.s32.totalorder %s27, 0
      %p226 = por %p224, %p225
      %p227 = scmp.ne.s32.totalorder %s213, %s214
      %p228 = scmp.eq.s32.totalorder %s28, 3
      %p229 = por %p227, %p228
      %p231 = scmp.ne.s32.totalorder %s214, %s230
      %p232 = scmp.eq.s32.totalorder %s28, 0
      %p233 = por %p231, %p232
      %p234 = scmp.le.s32.totalorder 1, %s22
      %p235 = scmp.lt.s32.totalorder %s22, 5
      %p236 = pnand %p234, %p235
      %p237 = pneg %p236
      // Predicated region
      $region9: #{tpu_custom_call.1} parent=5 // pred_check
        _
      $region10: #{tpu_custom_call.1} parent=5 // pred_check_branch
        %239 = sbr.rel (%p236) target = $region12
      $region11: #{tpu_custom_call.1} parent=5 // pred_region
        %s240 = ssub.s32 %s22, 1
        // Predicated region
        $region13: #{tpu_custom_call.1} parent=11 // pred_check
          %p241 = pneg %p137
        $region14: #{tpu_custom_call.1} parent=11 // pred_check_branch
          %243 = sbr.rel (%p241) target = $region16
        $region15: #{tpu_custom_call.1} parent=11 // pred_region
          _
        $region16: #{tpu_custom_call.1} parent=11 // pred_fallthru
          _
        // Predicated region
        $region17: #{tpu_custom_call.1} parent=11 // pred_check
          %p244 = pneg %p158
        $region18: #{tpu_custom_call.1} parent=11 // pred_check_branch
          %246 = sbr.rel (%p244) target = $region20
        $region19: #{tpu_custom_call.1} parent=11 // pred_region
          _
        $region20: #{tpu_custom_call.1} parent=11 // pred_fallthru
          _
        // Predicated region
        $region21: #{tpu_custom_call.1} parent=11 // pred_check
          %p247 = pneg %p179
        $region22: #{tpu_custom_call.1} parent=11 // pred_check_branch
          %249 = sbr.rel (%p247) target = $region24
        $region23: #{tpu_custom_call.1} parent=11 // pred_region
          _
        $region24: #{tpu_custom_call.1} parent=11 // pred_fallthru
          _
        // Predicated region
        $region25: #{tpu_custom_call.1} parent=11 // pred_check
          %p250 = pneg %p200
        $region26: #{tpu_custom_call.1} parent=11 // pred_check_branch
          %252 = sbr.rel (%p250) target = $region28
        $region27: #{tpu_custom_call.1} parent=11 // pred_region
          _
        $region28: #{tpu_custom_call.1} parent=11 // pred_fallthru
          _
      $region12: #{tpu_custom_call.1} parent=5 // pred_fallthru
        _
      %p253 = scmp.lt.s32.totalorder %s22, 4
      // Predicated region
      $region29: #{tpu_custom_call.1} parent=5 // pred_check
        %p254 = pneg %p253
      $region30: #{tpu_custom_call.1} parent=5 // pred_check_branch
        %256 = sbr.rel (%p254) target = $region32
      $region31: #{tpu_custom_call.1} parent=5 // pred_region
        // Predicated region
        $region33: #{tpu_custom_call.1} parent=31 // pred_check
          %p257 = pneg %p56
        $region34: #{tpu_custom_call.1} parent=31 // pred_check_branch
          %259 = sbr.rel (%p257) target = $region36
        $region35: #{tpu_custom_call.1} parent=31 // pred_region
          %s260 = sand.u32 %s46, 1
          %s261 = scalar_lea.sflag [#allocation4], %s260
          %s262 = sand.u32 %s46, 1
          %s263 = smul.addr %s262, 64
          %s264 = scalar_lea.vmem [#allocation3], %s263
          %s265 = smul.u32 16, %s29
          %s267 = ssub.s32 1024, 1024
          %268 = vsyncadd %s261, %s267
          %s269 = smul.addr %s265, 2
          %s270 = sadd.s32 %s30, %s269
          %s271 = smul.addr %s270, 64
          %s272 = scalar_lea.hbm %s0, %s271
          %s273 = sshll.u32 %s264, 4
          %s274 = int_to_ptr.vmem [resolvable:$true] %s273
          %279 = dma.hbm_to_vmem [thread:$0]  %s272, 1024, %s274, %s261, 128, 64, 4
        $region36: #{tpu_custom_call.1} parent=31 // pred_fallthru
          _
        // Predicated region
        $region37: #{tpu_custom_call.1} parent=31 // pred_check
          %p280 = pneg %p84
        $region38: #{tpu_custom_call.1} parent=31 // pred_check_branch
          %282 = sbr.rel (%p280) target = $region40
        $region39: #{tpu_custom_call.1} parent=31 // pred_region
          %s283 = sand.u32 %s74, 1
          %s284 = scalar_lea.sflag [#allocation7], %s283
          %s285 = sand.u32 %s74, 1
          %s286 = smul.addr %s285, 64
          %s287 = scalar_lea.vmem [#allocation6], %s286
          %s288 = smul.u32 16, %s29
          %s290 = ssub.s32 1024, 1024
          %291 = vsyncadd %s284, %s290
          %s292 = smul.addr %s288, 2
          %s293 = sadd.s32 %s30, %s292
          %s294 = smul.addr %s293, 64
          %s295 = scalar_lea.hbm %s1, %s294
          %s296 = sshll.u32 %s287, 4
          %s297 = int_to_ptr.vmem [resolvable:$true] %s296
          %302 = dma.hbm_to_vmem [thread:$0]  %s295, 1024, %s297, %s284, 128, 64, 4
        $region40: #{tpu_custom_call.1} parent=31 // pred_fallthru
          _
        // Predicated region
        $region41: #{tpu_custom_call.1} parent=31 // pred_check
          %p303 = pneg %p110
        $region42: #{tpu_custom_call.1} parent=31 // pred_check_branch
          %305 = sbr.rel (%p303) target = $region44
        $region43: #{tpu_custom_call.1} parent=31 // pred_region
          %s306 = smul.u32 16, %s30
          %p307 = scmp.lt.s32.totalorder %s306, 31
          %s308 = scalar_select %p307, %s306, 31
          %s309 = smul.addr %s308, 4
          %s310 = scalar_lea.vmem %s2, %s309
          %s311 = smul.u32 16, %s30
        $region44: #{tpu_custom_call.1} parent=31 // pred_fallthru
          _
      $region32: #{tpu_custom_call.1} parent=5 // pred_fallthru
        _
      %p312 = scmp.le.s32.totalorder 1, %s22
      %p313 = scmp.lt.s32.totalorder %s22, 5
      %p314 = pnand %p312, %p313
      %p315 = pneg %p314
      // Predicated region
      $region45: #{tpu_custom_call.1} parent=5 // pred_check
        _
      $region46: #{tpu_custom_call.1} parent=5 // pred_check_branch
        %317 = sbr.rel (%p314) target = $region48
      $region47: #{tpu_custom_call.1} parent=5 // pred_region
        %s318 = ssub.s32 %s22, 1
        %s319 = sand.u32 %s49, 1
        %s320 = scalar_lea.sflag [#allocation4], %s319
        %s321 = sand.u32 %s49, 1
        %s322 = smul.addr %s321, 64
        %s323 = scalar_lea.vmem [#allocation3], %s322
        // Predicated region
        $region49: #{tpu_custom_call.1} parent=47 // pred_check
          %p324 = pneg %p62
        $region50: #{tpu_custom_call.1} parent=47 // pred_check_branch
          %326 = sbr.rel (%p324) target = $region52
        $region51: #{tpu_custom_call.1} parent=47 // pred_region
          %327 = dma.done %s320, 1024
        $region52: #{tpu_custom_call.1} parent=47 // pred_fallthru
          _
        %s328 = sand.u32 %s77, 1
        %s329 = scalar_lea.sflag [#allocation7], %s328
        %s330 = sand.u32 %s77, 1
        %s331 = smul.addr %s330, 64
        %s332 = scalar_lea.vmem [#allocation6], %s331
        // Predicated region
        $region53: #{tpu_custom_call.1} parent=47 // pred_check
          %p333 = pneg %p90
        $region54: #{tpu_custom_call.1} parent=47 // pred_check_branch
          %335 = sbr.rel (%p333) target = $region56
        $region55: #{tpu_custom_call.1} parent=47 // pred_region
          %336 = dma.done %s329, 1024
        $region56: #{tpu_custom_call.1} parent=47 // pred_fallthru
          _
        %s337 = sand.u32 %s49, 1
        %s338 = scalar_lea.sflag [#allocation4], %s337
        %s339 = sand.u32 %s49, 1
        %s340 = smul.addr %s339, 64
        %s341 = scalar_lea.vmem [#allocation3], %s340
        %p342 = pneg %p62
        %p343 = pneg %p59
        %s344 = sand.u32 %s77, 1
        %s345 = scalar_lea.sflag [#allocation7], %s344
        %s346 = sand.u32 %s77, 1
        %s347 = smul.addr %s346, 64
        %s348 = scalar_lea.vmem [#allocation6], %s347
        %p349 = pneg %p90
        %p350 = pneg %p87
        %s351 = smul.u32 16, %s32
        %p352 = scmp.lt.s32.totalorder %s351, 31
        %s353 = scalar_select %p352, %s351, 31
        %s354 = smul.addr %s353, 4
        %s355 = scalar_lea.vmem %s2, %s354
        %p356 = pneg %p116
        %p357 = pneg %p113
        %p358 = pneg %p137
        %p359 = pneg %p134
        %p360 = pneg %p158
        %p361 = pneg %p155
        %p362 = pneg %p179
        %p363 = pneg %p176
        %p364 = pneg %p200
        %p365 = pneg %p197
        %p366 = pneg %p226
        %p367 = pneg %p223
        %s368 = sand.u32 %s213, 1
        %s369 = scalar_lea.sflag [#allocation5], %s368
        %s370 = sand.u32 %s213, 1
        %s371 = smul.addr %s370, 64
        %s372 = scalar_lea.vmem [#allocation8], %s371
        %s373 = smul.u32 16, %s31
        %s374 = smul.u32 16, %s31
        %s375 = smul.u32 16, %s32
        %p376 = scmp.lt.s32.totalorder %s375, 31
        %s377 = scalar_select %p376, %s375, 31
        %s378 = smul.addr %s377, 4
        %s379 = scalar_lea.vmem %s2, %s378
        %s380 = smul.u32 16, %s32
        %s381 = smul.u32 16, %s31
        %p383 = scmp.eq.s32.totalorder %s32, 0
        // Predicated region
        $region57: #{tpu_custom_call.1} parent=47 // pred_check
          %p384 = pneg %p383
        $region58: #{tpu_custom_call.1} parent=47 // pred_check_branch
          %386 = sbr.rel (%p384) target = $region60
        $region59: #{tpu_custom_call.1} parent=47 // pred_region
          %vm387 = vcmask 261120
          %388 = vst.msk [vmem:[#allocation2] sm:$0xff] %vm387, 0.0
          %389 = vst.msk [vmem:[#allocation2 + $0x8] sm:$0xff] %vm387, 0.0
          %390 = vst.msk [vmem:[#allocation2 + $0x10] sm:$0xff] %vm387, 0.0
          %391 = vst.msk [vmem:[#allocation2 + $0x18] sm:$0xff] %vm387, 0.0
          %392 = vst.msk [vmem:[#allocation2 + $0x20] sm:$0xff] %vm387, 0.0
          %393 = vst.msk [vmem:[#allocation2 + $0x28] sm:$0xff] %vm387, 0.0
          %394 = vst.msk [vmem:[#allocation2 + $0x30] sm:$0xff] %vm387, 0.0
          %395 = vst.msk [vmem:[#allocation2 + $0x38] sm:$0xff] %vm387, 0.0
          %396 = vst.msk [vmem:[#allocation2 + $0x40] sm:$0xff] %vm387, 0.0
          %397 = vst.msk [vmem:[#allocation2 + $0x48] sm:$0xff] %vm387, 0.0
          %398 = vst.msk [vmem:[#allocation2 + $0x50] sm:$0xff] %vm387, 0.0
          %399 = vst.msk [vmem:[#allocation2 + $0x58] sm:$0xff] %vm387, 0.0
          %400 = vst.msk [vmem:[#allocation2 + $0x60] sm:$0xff] %vm387, 0.0
          %401 = vst.msk [vmem:[#allocation2 + $0x68] sm:$0xff] %vm387, 0.0
          %402 = vst.msk [vmem:[#allocation2 + $0x70] sm:$0xff] %vm387, 0.0
          %403 = vst.msk [vmem:[#allocation2 + $0x78] sm:$0xff] %vm387, 0.0
        $region60: #{tpu_custom_call.1} parent=47 // pred_fallthru
          _
        %v404 = vld [vmem:[%s379] sm:$0xf]
        %v405 = vld [vmem:[%s379 + $0x4] sm:$0xf]
        %v406 = vld [vmem:[%s379 + $0x8] sm:$0xf]
        %v407 = vld [vmem:[%s379 + $0xc] sm:$0xf]
        %v408 = vld [vmem:[%s379 + $0x10] sm:$0xf]
        %v409 = vld [vmem:[%s379 + $0x14] sm:$0xf]
        %v410 = vld [vmem:[%s379 + $0x18] sm:$0xf]
        %v411 = vld [vmem:[%s379 + $0x1c] sm:$0xf]
        %v412 = vld [vmem:[%s379 + $0x20] sm:$0xf]
        %v413 = vld [vmem:[%s379 + $0x24] sm:$0xf]
        %v414 = vld [vmem:[%s379 + $0x28] sm:$0xf]
        %v415 = vld [vmem:[%s379 + $0x2c] sm:$0xf]
        %v416 = vld [vmem:[%s379 + $0x30] sm:$0xf]
        %v417 = vld [vmem:[%s379 + $0x34] sm:$0xf]
        %v418 = vld [vmem:[%s379 + $0x38] sm:$0xf]
        %v419 = vld [vmem:[%s379 + $0x3c] sm:$0xf]
        %v420 = vld [vmem:[%s3] sm:$0xf]
        %v421 = vld [vmem:[%s3 + $0x4] sm:$0xf]
        %v422 = vld [vmem:[%s3 + $0x8] sm:$0xf]
        %v423 = vld [vmem:[%s3 + $0xc] sm:$0xf]
        %v424 = vld [vmem:[%s3 + $0x10] sm:$0xf]
        %v425 = vld [vmem:[%s3 + $0x14] sm:$0xf]
        %v426 = vld [vmem:[%s3 + $0x18] sm:$0xf]
        %v427 = vld [vmem:[%s3 + $0x1c] sm:$0xf]
        %v444 = vunpack.c.l.b16 %v404
        %v445 = vunpack.c.l.b16 %v405
        %v446 = vunpack.c.l.b16 %v406
        %v447 = vunpack.c.l.b16 %v407
        %v448 = vunpack.c.l.b16 %v408
        %v449 = vunpack.c.l.b16 %v409
        %v450 = vunpack.c.l.b16 %v410
        %v451 = vunpack.c.l.b16 %v411
        %v452 = vunpack.c.l.b16 %v412
        %v453 = vunpack.c.l.b16 %v413
        %v454 = vunpack.c.l.b16 %v414
        %v455 = vunpack.c.l.b16 %v415
        %v456 = vunpack.c.l.b16 %v416
        %v457 = vunpack.c.l.b16 %v417
        %v458 = vunpack.c.l.b16 %v418
        %v459 = vunpack.c.l.b16 %v419
        %v460 = vpack.c.b16 %v445, %v444
        %v461 = vpack.c.b16 %v447, %v446
        %v462 = vpack.c.b16 %v449, %v448
        %v463 = vpack.c.b16 %v451, %v450
        %v464 = vpack.c.b16 %v453, %v452
        %v465 = vpack.c.b16 %v455, %v454
        %v466 = vpack.c.b16 %v457, %v456
        %v467 = vpack.c.b16 %v459, %v458
        %v476 = vunpack.c.l.b16 %v420
        %v477 = vunpack.c.l.b16 %v421
        %v478 = vunpack.c.l.b16 %v422
        %v479 = vunpack.c.l.b16 %v423
        %v480 = vunpack.c.l.b16 %v424
        %v481 = vunpack.c.l.b16 %v425
        %v482 = vunpack.c.l.b16 %v426
        %v483 = vunpack.c.l.b16 %v427
        %v484 = vpack.c.b16 %v477, %v476
        %v485 = vpack.c.b16 %v479, %v478
        %v486 = vpack.c.b16 %v481, %v480
        %v487 = vpack.c.b16 %v483, %v482
        %vm492 = vcmask 523264
        %v494 = vsel %vm492, %v460, 0
        %v497 = vsel %vm492, %v461, 0
        %v500 = vsel %vm492, %v462, 0
        %v503 = vsel %vm492, %v463, 0
        %v506 = vsel %vm492, %v464, 0
        %v509 = vsel %vm492, %v465, 0
        %v512 = vsel %vm492, %v466, 0
        %v515 = vsel %vm492, %v467, 0
        %517 = vmatprep.subr.bf16.mxu0 0
        %518 = vmatpush1.bf16.msra.mxu0 %v484
        %519 = vmatprep.subr.bf16.mxu0 0
        %520 = vmatpush1.bf16.msra.mxu0 %v485
        %521 = vmatprep.subr.bf16.mxu0 0
        %522 = vmatpush1.bf16.msra.mxu0 %v486
        %523 = vmatprep.subr.bf16.mxu0 0
        %524 = vmatpush1.bf16.msra.mxu0 %v487
        %525 = vmatprep.subr.bf16.mxu0 0
        %526 = vmatpush1.bf16.msra.mxu0 0
        %527 = vmatprep.subr.bf16.mxu0 0
        %528 = vmatpush1.bf16.msra.mxu0 0
        %529 = vmatprep.subr.bf16.mxu0 0
        %530 = vmatpush1.bf16.msra.mxu0 0
        %531 = vmatprep.subr.bf16.mxu0 0
        %532 = vmatpush1.bf16.msra.mxu0 0
        %533 = vmatprep.subr.bf16.mxu0 0
        %534 = vmatpush1.bf16.msra.mxu0 0
        %535 = vmatprep.subr.bf16.mxu0 0
        %536 = vmatpush1.bf16.msra.mxu0 0
        %537 = vmatprep.subr.bf16.mxu0 0
        %538 = vmatpush1.bf16.msra.mxu0 0
        %539 = vmatprep.subr.bf16.mxu0 0
        %540 = vmatpush1.bf16.msra.mxu0 0
        %541 = vmatprep.subr.bf16.mxu0 0
        %542 = vmatpush1.bf16.msra.mxu0 0
        %543 = vmatprep.subr.bf16.mxu0 0
        %544 = vmatpush1.bf16.msra.mxu0 0
        %545 = vmatprep.subr.bf16.mxu0 0
        %546 = vmatpush1.bf16.msra.mxu0 0
        %547 = vmatprep.subr.bf16.mxu0 0
        %548 = vmatpush1.bf16.msra.mxu0 0
        %549 = vmatprep.mubr.bf16.mxu0 0
        %550 = vmatmul.mubr.bf16.gmra.mrb[0].mxu0 %v494
        %v551 = vpop.f32.mrb[0].mxu0
        %v552 = vadd.f32 0.0, %v551
        %v553 = vpop.f32.mrb[0].mxu0
        %v554 = vpop.f32.mrb[0].mxu0
        %v555 = vadd.f32 0.0, %v554
        %v556 = vpop.f32.mrb[0].mxu0
        %557 = vmatprep.mubr.bf16.mxu0 0
        %558 = vmatmul.mubr.bf16.gmra.mrb[0].mxu0 %v497
        %v559 = vpop.f32.mrb[0].mxu0
        %v560 = vadd.f32 0.0, %v559
        %v561 = vpop.f32.mrb[0].mxu0
        %v562 = vpop.f32.mrb[0].mxu0
        %v563 = vadd.f32 0.0, %v562
        %v564 = vpop.f32.mrb[0].mxu0
        %565 = vmatprep.mubr.bf16.mxu0 0
        %566 = vmatmul.mubr.bf16.gmra.mrb[0].mxu0 %v500
        %v567 = vpop.f32.mrb[0].mxu0
        %v568 = vadd.f32 0.0, %v567
        %v569 = vpop.f32.mrb[0].mxu0
        %v570 = vpop.f32.mrb[0].mxu0
        %v571 = vadd.f32 0.0, %v570
        %v572 = vpop.f32.mrb[0].mxu0
        %573 = vmatprep.mubr.bf16.mxu0 0
        %574 = vmatmul.mubr.bf16.gmra.mrb[0].mxu0 %v503
        %v575 = vpop.f32.mrb[0].mxu0
        %v576 = vadd.f32 0.0, %v575
        %v577 = vpop.f32.mrb[0].mxu0
        %v578 = vpop.f32.mrb[0].mxu0
        %v579 = vadd.f32 0.0, %v578
        %v580 = vpop.f32.mrb[0].mxu0
        %581 = vmatprep.mubr.bf16.mxu0 0
        %582 = vmatmul.mubr.bf16.gmra.mrb[0].mxu0 %v506
        %v583 = vpop.f32.mrb[0].mxu0
        %v584 = vadd.f32 0.0, %v583
        %v585 = vpop.f32.mrb[0].mxu0
        %v586 = vpop.f32.mrb[0].mxu0
        %v587 = vadd.f32 0.0, %v586
        %v588 = vpop.f32.mrb[0].mxu0
        %589 = vmatprep.mubr.bf16.mxu0 0
        %590 = vmatmul.mubr.bf16.gmra.mrb[0].mxu0 %v509
        %v591 = vpop.f32.mrb[0].mxu0
        %v592 = vadd.f32 0.0, %v591
        %v593 = vpop.f32.mrb[0].mxu0
        %v594 = vpop.f32.mrb[0].mxu0
        %v595 = vadd.f32 0.0, %v594
        %v596 = vpop.f32.mrb[0].mxu0
        %597 = vmatprep.mubr.bf16.mxu0 0
        %598 = vmatmul.mubr.bf16.gmra.mrb[0].mxu0 %v512
        %v599 = vpop.f32.mrb[0].mxu0
        %v600 = vadd.f32 0.0, %v599
        %v601 = vpop.f32.mrb[0].mxu0
        %v602 = vpop.f32.mrb[0].mxu0
        %v603 = vadd.f32 0.0, %v602
        %v604 = vpop.f32.mrb[0].mxu0
        %605 = vmatprep.mubr.bf16.mxu0 0
        %606 = vmatmul.mubr.bf16.gmra.mrb[0].mxu0 %v515
        %v607 = vpop.f32.mrb[0].mxu0
        %v608 = vadd.f32 0.0, %v607
        %v609 = vpop.f32.mrb[0].mxu0
        %v610 = vpop.f32.mrb[0].mxu0
        %v611 = vadd.f32 0.0, %v610
        %v612 = vpop.f32.mrb[0].mxu0
        %613 = vdwg.mxu0
        %v614 = vlaneseq
        %v615 = vand.u32 %v614, 127
        %vm616 = vcmp.lt.s32.totalorder %v615, 16
        %v617 = vsel %vm616, %v552, 0.0
        %v618 = vsel %vm616, %v555, 0.0
        %v619 = vsel %vm616, %v560, 0.0
        %v620 = vsel %vm616, %v563, 0.0
        %v621 = vsel %vm616, %v568, 0.0
        %v622 = vsel %vm616, %v571, 0.0
        %v623 = vsel %vm616, %v576, 0.0
        %v624 = vsel %vm616, %v579, 0.0
        %v625 = vsel %vm616, %v584, 0.0
        %v626 = vsel %vm616, %v587, 0.0
        %v627 = vsel %vm616, %v592, 0.0
        %v628 = vsel %vm616, %v595, 0.0
        %v629 = vsel %vm616, %v600, 0.0
        %v630 = vsel %vm616, %v603, 0.0
        %v631 = vsel %vm616, %v608, 0.0
        %v632 = vsel %vm616, %v611, 0.0
        %v633 = vpack.c.bf16 %v618, %v617
        %v634 = vpack.c.bf16 %v620, %v619
        %v635 = vpack.c.bf16 %v622, %v621
        %v636 = vpack.c.bf16 %v624, %v623
        %v637 = vpack.c.bf16 %v626, %v625
        %v638 = vpack.c.bf16 %v628, %v627
        %v639 = vpack.c.bf16 %v630, %v629
        %v640 = vpack.c.bf16 %v632, %v631
        %vm641 = vcmp.ge.s32.totalorder %v615, 16
        %v642 = vsel %vm641, %v552, 0.0
        %v643 = vsel %vm641, %v555, 0.0
        %v644 = vsel %vm641, %v560, 0.0
        %v645 = vsel %vm641, %v563, 0.0
        %v646 = vsel %vm641, %v568, 0.0
        %v647 = vsel %vm641, %v571, 0.0
        %v648 = vsel %vm641, %v576, 0.0
        %v649 = vsel %vm641, %v579, 0.0
        %v650 = vsel %vm641, %v584, 0.0
        %v651 = vsel %vm641, %v587, 0.0
        %v652 = vsel %vm641, %v592, 0.0
        %v653 = vsel %vm641, %v595, 0.0
        %v654 = vsel %vm641, %v600, 0.0
        %v655 = vsel %vm641, %v603, 0.0
        %v656 = vsel %vm641, %v608, 0.0
        %v657 = vsel %vm641, %v611, 0.0
        %v658 = vpack.c.bf16 %v643, %v642
        %v659 = vpack.c.bf16 %v645, %v644
        %v660 = vpack.c.bf16 %v647, %v646
        %v661 = vpack.c.bf16 %v649, %v648
        %v662 = vpack.c.bf16 %v651, %v650
        %v663 = vpack.c.bf16 %v653, %v652
        %v664 = vpack.c.bf16 %v655, %v654
        %v665 = vpack.c.bf16 %v657, %v656
        %v666 = vld [vmem:[#allocation2] sm:$0xff]
        %v667 = vld [vmem:[#allocation2 + $0x8] sm:$0xff]
        %v668 = vld [vmem:[#allocation2 + $0x10] sm:$0xff]
        %v669 = vld [vmem:[#allocation2 + $0x18] sm:$0xff]
        %v670 = vld [vmem:[#allocation2 + $0x20] sm:$0xff]
        %v671 = vld [vmem:[#allocation2 + $0x28] sm:$0xff]
        %v672 = vld [vmem:[#allocation2 + $0x30] sm:$0xff]
        %v673 = vld [vmem:[#allocation2 + $0x38] sm:$0xff]
        %v674 = vld [vmem:[#allocation2 + $0x40] sm:$0xff]
        %v675 = vld [vmem:[#allocation2 + $0x48] sm:$0xff]
        %v676 = vld [vmem:[#allocation2 + $0x50] sm:$0xff]
        %v677 = vld [vmem:[#allocation2 + $0x58] sm:$0xff]
        %v678 = vld [vmem:[#allocation2 + $0x60] sm:$0xff]
        %v679 = vld [vmem:[#allocation2 + $0x68] sm:$0xff]
        %v680 = vld [vmem:[#allocation2 + $0x70] sm:$0xff]
        %v681 = vld [vmem:[#allocation2 + $0x78] sm:$0xff]
        %v682 = vld [vmem:[%s323] sm:$0xf]
        %v683 = vld [vmem:[%s323 + $0x4] sm:$0xf]
        %v684 = vld [vmem:[%s323 + $0x8] sm:$0xf]
        %v685 = vld [vmem:[%s323 + $0xc] sm:$0xf]
        %v686 = vld [vmem:[%s323 + $0x10] sm:$0xf]
        %v687 = vld [vmem:[%s323 + $0x14] sm:$0xf]
        %v688 = vld [vmem:[%s323 + $0x18] sm:$0xf]
        %v689 = vld [vmem:[%s323 + $0x1c] sm:$0xf]
        %v690 = vld [vmem:[%s323 + $0x20] sm:$0xf]
        %v691 = vld [vmem:[%s323 + $0x24] sm:$0xf]
        %v692 = vld [vmem:[%s323 + $0x28] sm:$0xf]
        %v693 = vld [vmem:[%s323 + $0x2c] sm:$0xf]
        %v694 = vld [vmem:[%s323 + $0x30] sm:$0xf]
        %v695 = vld [vmem:[%s323 + $0x34] sm:$0xf]
        %v696 = vld [vmem:[%s323 + $0x38] sm:$0xf]
        %v697 = vld [vmem:[%s323 + $0x3c] sm:$0xf]
        %v698 = vld [vmem:[%s332] sm:$0xf]
        %v699 = vld [vmem:[%s332 + $0x4] sm:$0xf]
        %v700 = vld [vmem:[%s332 + $0x8] sm:$0xf]
        %v701 = vld [vmem:[%s332 + $0xc] sm:$0xf]
        %v702 = vld [vmem:[%s332 + $0x10] sm:$0xf]
        %v703 = vld [vmem:[%s332 + $0x14] sm:$0xf]
        %v704 = vld [vmem:[%s332 + $0x18] sm:$0xf]
        %v705 = vld [vmem:[%s332 + $0x1c] sm:$0xf]
        %v706 = vld [vmem:[%s332 + $0x20] sm:$0xf]
        %v707 = vld [vmem:[%s332 + $0x24] sm:$0xf]
        %v708 = vld [vmem:[%s332 + $0x28] sm:$0xf]
        %v709 = vld [vmem:[%s332 + $0x2c] sm:$0xf]
        %v710 = vld [vmem:[%s332 + $0x30] sm:$0xf]
        %v711 = vld [vmem:[%s332 + $0x34] sm:$0xf]
        %v712 = vld [vmem:[%s332 + $0x38] sm:$0xf]
        %v713 = vld [vmem:[%s332 + $0x3c] sm:$0xf]
        %v730 = vunpack.c.l.b16 %v698
        %v731 = vunpack.c.l.b16 %v699
        %v732 = vunpack.c.l.b16 %v700
        %v733 = vunpack.c.l.b16 %v701
        %v734 = vunpack.c.l.b16 %v702
        %v735 = vunpack.c.l.b16 %v703
        %v736 = vunpack.c.l.b16 %v704
        %v737 = vunpack.c.l.b16 %v705
        %v738 = vunpack.c.l.b16 %v706
        %v739 = vunpack.c.l.b16 %v707
        %v740 = vunpack.c.l.b16 %v708
        %v741 = vunpack.c.l.b16 %v709
        %v742 = vunpack.c.l.b16 %v710
        %v743 = vunpack.c.l.b16 %v711
        %v744 = vunpack.c.l.b16 %v712
        %v745 = vunpack.c.l.b16 %v713
        %v746 = vpack.c.b16 %v731, %v730
        %v747 = vpack.c.b16 %v733, %v732
        %v748 = vpack.c.b16 %v735, %v734
        %v749 = vpack.c.b16 %v737, %v736
        %v750 = vpack.c.b16 %v739, %v738
        %v751 = vpack.c.b16 %v741, %v740
        %v752 = vpack.c.b16 %v743, %v742
        %v753 = vpack.c.b16 %v745, %v744
        %762 = vmatprep.subr.bf16.mxu0 0
        %763 = vmatpush1.bf16.msra.mxu0 %v658
        %764 = vmatprep.subr.bf16.mxu0 0
        %765 = vmatpush1.bf16.msra.mxu0 %v659
        %766 = vmatprep.subr.bf16.mxu0 0
        %767 = vmatpush1.bf16.msra.mxu0 %v660
        %768 = vmatprep.subr.bf16.mxu0 0
        %769 = vmatpush1.bf16.msra.mxu0 %v661
        %770 = vmatprep.subr.bf16.mxu0 0
        %771 = vmatpush1.bf16.msra.mxu0 %v662
        %772 = vmatprep.subr.bf16.mxu0 0
        %773 = vmatpush1.bf16.msra.mxu0 %v663
        %774 = vmatprep.subr.bf16.mxu0 0
        %775 = vmatpush1.bf16.msra.mxu0 %v664
        %776 = vmatprep.subr.bf16.mxu0 0
        %777 = vmatpush1.bf16.msra.mxu0 %v665
        %778 = vmatprep.subr.bf16.mxu0 0
        %779 = vmatpush1.bf16.msra.mxu0 0
        %780 = vmatprep.subr.bf16.mxu0 0
        %781 = vmatpush1.bf16.msra.mxu0 0
        %782 = vmatprep.subr.bf16.mxu0 0
        %783 = vmatpush1.bf16.msra.mxu0 0
        %784 = vmatprep.subr.bf16.mxu0 0
        %785 = vmatpush1.bf16.msra.mxu0 0
        %786 = vmatprep.subr.bf16.mxu0 0
        %787 = vmatpush1.bf16.msra.mxu0 0
        %788 = vmatprep.subr.bf16.mxu0 0
        %789 = vmatpush1.bf16.msra.mxu0 0
        %790 = vmatprep.subr.bf16.mxu0 0
        %791 = vmatpush1.bf16.msra.mxu0 0
        %792 = vmatprep.subr.bf16.mxu0 0
        %793 = vmatpush1.bf16.msra.mxu0 0
        %794 = vmatprep.mubr.bf16.mxu0 0
        %795 = vmatmul.mubr.bf16.gmra.mrb[0].mxu0 %v746
        %v796 = vpop.f32.mrb[0].mxu0
        %v797 = vadd.f32 0.0, %v796
        %v798 = vpop.f32.mrb[0].mxu0
        %v799 = vpop.f32.mrb[0].mxu0
        %v800 = vadd.f32 0.0, %v799
        %v801 = vpop.f32.mrb[0].mxu0
        %802 = vmatprep.mubr.bf16.mxu0 0
        %803 = vmatmul.mubr.bf16.gmra.mrb[0].mxu0 %v747
        %v804 = vpop.f32.mrb[0].mxu0
        %v805 = vadd.f32 0.0, %v804
        %v806 = vpop.f32.mrb[0].mxu0
        %v807 = vpop.f32.mrb[0].mxu0
        %v808 = vadd.f32 0.0, %v807
        %v809 = vpop.f32.mrb[0].mxu0
        %810 = vmatprep.mubr.bf16.mxu0 0
        %811 = vmatmul.mubr.bf16.gmra.mrb[0].mxu0 %v748
        %v812 = vpop.f32.mrb[0].mxu0
        %v813 = vadd.f32 0.0, %v812
        %v814 = vpop.f32.mrb[0].mxu0
        %v815 = vpop.f32.mrb[0].mxu0
        %v816 = vadd.f32 0.0, %v815
        %v817 = vpop.f32.mrb[0].mxu0
        %818 = vmatprep.mubr.bf16.mxu0 0
        %819 = vmatmul.mubr.bf16.gmra.mrb[0].mxu0 %v749
        %v820 = vpop.f32.mrb[0].mxu0
        %v821 = vadd.f32 0.0, %v820
        %v822 = vpop.f32.mrb[0].mxu0
        %v823 = vpop.f32.mrb[0].mxu0
        %v824 = vadd.f32 0.0, %v823
        %v825 = vpop.f32.mrb[0].mxu0
        %826 = vmatprep.mubr.bf16.mxu0 0
        %827 = vmatmul.mubr.bf16.gmra.mrb[0].mxu0 %v750
        %v828 = vpop.f32.mrb[0].mxu0
        %v829 = vadd.f32 0.0, %v828
        %v830 = vpop.f32.mrb[0].mxu0
        %v831 = vpop.f32.mrb[0].mxu0
        %v832 = vadd.f32 0.0, %v831
        %v833 = vpop.f32.mrb[0].mxu0
        %834 = vmatprep.mubr.bf16.mxu0 0
        %835 = vmatmul.mubr.bf16.gmra.mrb[0].mxu0 %v751
        %v836 = vpop.f32.mrb[0].mxu0
        %v837 = vadd.f32 0.0, %v836
        %v838 = vpop.f32.mrb[0].mxu0
        %v839 = vpop.f32.mrb[0].mxu0
        %v840 = vadd.f32 0.0, %v839
        %v841 = vpop.f32.mrb[0].mxu0
        %842 = vmatprep.mubr.bf16.mxu0 0
        %843 = vmatmul.mubr.bf16.gmra.mrb[0].mxu0 %v752
        %v844 = vpop.f32.mrb[0].mxu0
        %v845 = vadd.f32 0.0, %v844
        %v846 = vpop.f32.mrb[0].mxu0
        %v847 = vpop.f32.mrb[0].mxu0
        %v848 = vadd.f32 0.0, %v847
        %v849 = vpop.f32.mrb[0].mxu0
        %850 = vmatprep.mubr.bf16.mxu0 0
        %851 = vmatmul.mubr.bf16.gmra.mrb[0].mxu0 %v753
        %v852 = vpop.f32.mrb[0].mxu0
        %v853 = vadd.f32 0.0, %v852
        %v854 = vpop.f32.mrb[0].mxu0
        %v855 = vpop.f32.mrb[0].mxu0
        %v856 = vadd.f32 0.0, %v855
        %v857 = vpop.f32.mrb[0].mxu0
        %858 = vdwg.mxu0
        %v875 = vunpack.c.l.b16 %v682
        %v876 = vunpack.c.l.b16 %v683
        %v877 = vunpack.c.l.b16 %v684
        %v878 = vunpack.c.l.b16 %v685
        %v879 = vunpack.c.l.b16 %v686
        %v880 = vunpack.c.l.b16 %v687
        %v881 = vunpack.c.l.b16 %v688
        %v882 = vunpack.c.l.b16 %v689
        %v883 = vunpack.c.l.b16 %v690
        %v884 = vunpack.c.l.b16 %v691
        %v885 = vunpack.c.l.b16 %v692
        %v886 = vunpack.c.l.b16 %v693
        %v887 = vunpack.c.l.b16 %v694
        %v888 = vunpack.c.l.b16 %v695
        %v889 = vunpack.c.l.b16 %v696
        %v890 = vunpack.c.l.b16 %v697
        %v891 = vpack.c.b16 %v876, %v875
        %v892 = vpack.c.b16 %v878, %v877
        %v893 = vpack.c.b16 %v880, %v879
        %v894 = vpack.c.b16 %v882, %v881
        %v895 = vpack.c.b16 %v884, %v883
        %v896 = vpack.c.b16 %v886, %v885
        %v897 = vpack.c.b16 %v888, %v887
        %v898 = vpack.c.b16 %v890, %v889
        %907 = vmatprep.subr.bf16.mxu0 0
        %908 = vmatpush1.bf16.msra.mxu0 %v633
        %909 = vmatprep.subr.bf16.mxu0 0
        %910 = vmatpush1.bf16.msra.mxu0 %v634
        %911 = vmatprep.subr.bf16.mxu0 0
        %912 = vmatpush1.bf16.msra.mxu0 %v635
        %913 = vmatprep.subr.bf16.mxu0 0
        %914 = vmatpush1.bf16.msra.mxu0 %v636
        %915 = vmatprep.subr.bf16.mxu0 0
        %916 = vmatpush1.bf16.msra.mxu0 %v637
        %917 = vmatprep.subr.bf16.mxu0 0
        %918 = vmatpush1.bf16.msra.mxu0 %v638
        %919 = vmatprep.subr.bf16.mxu0 0
        %920 = vmatpush1.bf16.msra.mxu0 %v639
        %921 = vmatprep.subr.bf16.mxu0 0
        %922 = vmatpush1.bf16.msra.mxu0 %v640
        %923 = vmatprep.subr.bf16.mxu0 0
        %924 = vmatpush1.bf16.msra.mxu0 0
        %925 = vmatprep.subr.bf16.mxu0 0
        %926 = vmatpush1.bf16.msra.mxu0 0
        %927 = vmatprep.subr.bf16.mxu0 0
        %928 = vmatpush1.bf16.msra.mxu0 0
        %929 = vmatprep.subr.bf16.mxu0 0
        %930 = vmatpush1.bf16.msra.mxu0 0
        %931 = vmatprep.subr.bf16.mxu0 0
        %932 = vmatpush1.bf16.msra.mxu0 0
        %933 = vmatprep.subr.bf16.mxu0 0
        %934 = vmatpush1.bf16.msra.mxu0 0
        %935 = vmatprep.subr.bf16.mxu0 0
        %936 = vmatpush1.bf16.msra.mxu0 0
        %937 = vmatprep.subr.bf16.mxu0 0
        %938 = vmatpush1.bf16.msra.mxu0 0
        %939 = vmatprep.mubr.bf16.mxu0 0
        %940 = vmatmul.mubr.bf16.gmra.mrb[0].mxu0 %v891
        %v941 = vpop.f32.mrb[0].mxu0
        %v942 = vadd.f32 %v797, %v941
        %v943 = vpop.f32.mrb[0].mxu0
        %v944 = vpop.f32.mrb[0].mxu0
        %v945 = vadd.f32 %v800, %v944
        %v946 = vpop.f32.mrb[0].mxu0
        %947 = vmatprep.mubr.bf16.mxu0 0
        %948 = vmatmul.mubr.bf16.gmra.mrb[0].mxu0 %v892
        %v949 = vpop.f32.mrb[0].mxu0
        %v950 = vadd.f32 %v805, %v949
        %v951 = vpop.f32.mrb[0].mxu0
        %v952 = vpop.f32.mrb[0].mxu0
        %v953 = vadd.f32 %v808, %v952
        %v954 = vpop.f32.mrb[0].mxu0
        %955 = vmatprep.mubr.bf16.mxu0 0
        %956 = vmatmul.mubr.bf16.gmra.mrb[0].mxu0 %v893
        %v957 = vpop.f32.mrb[0].mxu0
        %v958 = vadd.f32 %v813, %v957
        %v959 = vpop.f32.mrb[0].mxu0
        %v960 = vpop.f32.mrb[0].mxu0
        %v961 = vadd.f32 %v816, %v960
        %v962 = vpop.f32.mrb[0].mxu0
        %963 = vmatprep.mubr.bf16.mxu0 0
        %964 = vmatmul.mubr.bf16.gmra.mrb[0].mxu0 %v894
        %v965 = vpop.f32.mrb[0].mxu0
        %v966 = vadd.f32 %v821, %v965
        %v967 = vpop.f32.mrb[0].mxu0
        %v968 = vpop.f32.mrb[0].mxu0
        %v969 = vadd.f32 %v824, %v968
        %v970 = vpop.f32.mrb[0].mxu0
        %971 = vmatprep.mubr.bf16.mxu0 0
        %972 = vmatmul.mubr.bf16.gmra.mrb[0].mxu0 %v895
        %v973 = vpop.f32.mrb[0].mxu0
        %v974 = vadd.f32 %v829, %v973
        %v975 = vpop.f32.mrb[0].mxu0
        %v976 = vpop.f32.mrb[0].mxu0
        %v977 = vadd.f32 %v832, %v976
        %v978 = vpop.f32.mrb[0].mxu0
        %979 = vmatprep.mubr.bf16.mxu0 0
        %980 = vmatmul.mubr.bf16.gmra.mrb[0].mxu0 %v896
        %v981 = vpop.f32.mrb[0].mxu0
        %v982 = vadd.f32 %v837, %v981
        %v983 = vpop.f32.mrb[0].mxu0
        %v984 = vpop.f32.mrb[0].mxu0
        %v985 = vadd.f32 %v840, %v984
        %v986 = vpop.f32.mrb[0].mxu0
        %987 = vmatprep.mubr.bf16.mxu0 0
        %988 = vmatmul.mubr.bf16.gmra.mrb[0].mxu0 %v897
        %v989 = vpop.f32.mrb[0].mxu0
        %v990 = vadd.f32 %v845, %v989
        %v991 = vpop.f32.mrb[0].mxu0
        %v992 = vpop.f32.mrb[0].mxu0
        %v993 = vadd.f32 %v848, %v992
        %v994 = vpop.f32.mrb[0].mxu0
        %995 = vmatprep.mubr.bf16.mxu0 0
        %996 = vmatmul.mubr.bf16.gmra.mrb[0].mxu0 %v898
        %v997 = vpop.f32.mrb[0].mxu0
        %v998 = vadd.f32 %v853, %v997
        %v999 = vpop.f32.mrb[0].mxu0
        %v1000 = vpop.f32.mrb[0].mxu0
        %v1001 = vadd.f32 %v856, %v1000
        %v1002 = vpop.f32.mrb[0].mxu0
        %1003 = vdwg.mxu0
        %v1004 = vadd.f32 %v666, %v942
        %v1005 = vadd.f32 %v667, %v945
        %v1006 = vadd.f32 %v668, %v950
        %v1007 = vadd.f32 %v669, %v953
        %v1008 = vadd.f32 %v670, %v958
        %v1009 = vadd.f32 %v671, %v961
        %v1010 = vadd.f32 %v672, %v966
        %v1011 = vadd.f32 %v673, %v969
        %v1012 = vadd.f32 %v674, %v974
        %v1013 = vadd.f32 %v675, %v977
        %v1014 = vadd.f32 %v676, %v982
        %v1015 = vadd.f32 %v677, %v985
        %v1016 = vadd.f32 %v678, %v990
        %v1017 = vadd.f32 %v679, %v993
        %v1018 = vadd.f32 %v680, %v998
        %v1019 = vadd.f32 %v681, %v1001
        %vm1020 = vcmask 261120
        %1021 = vst.msk [vmem:[#allocation2] sm:$0xff] %vm1020, %v1004
        %1022 = vst.msk [vmem:[#allocation2 + $0x8] sm:$0xff] %vm1020, %v1005
        %1023 = vst.msk [vmem:[#allocation2 + $0x10] sm:$0xff] %vm1020, %v1006
        %1024 = vst.msk [vmem:[#allocation2 + $0x18] sm:$0xff] %vm1020, %v1007
        %1025 = vst.msk [vmem:[#allocation2 + $0x20] sm:$0xff] %vm1020, %v1008
        %1026 = vst.msk [vmem:[#allocation2 + $0x28] sm:$0xff] %vm1020, %v1009
        %1027 = vst.msk [vmem:[#allocation2 + $0x30] sm:$0xff] %vm1020, %v1010
        %1028 = vst.msk [vmem:[#allocation2 + $0x38] sm:$0xff] %vm1020, %v1011
        %1029 = vst.msk [vmem:[#allocation2 + $0x40] sm:$0xff] %vm1020, %v1012
        %1030 = vst.msk [vmem:[#allocation2 + $0x48] sm:$0xff] %vm1020, %v1013
        %1031 = vst.msk [vmem:[#allocation2 + $0x50] sm:$0xff] %vm1020, %v1014
        %1032 = vst.msk [vmem:[#allocation2 + $0x58] sm:$0xff] %vm1020, %v1015
        %1033 = vst.msk [vmem:[#allocation2 + $0x60] sm:$0xff] %vm1020, %v1016
        %1034 = vst.msk [vmem:[#allocation2 + $0x68] sm:$0xff] %vm1020, %v1017
        %1035 = vst.msk [vmem:[#allocation2 + $0x70] sm:$0xff] %vm1020, %v1018
        %1036 = vst.msk [vmem:[#allocation2 + $0x78] sm:$0xff] %vm1020, %v1019
        %p1037 = scmp.eq.s32.totalorder %s32, 1
        // Predicated region
        $region61: #{tpu_custom_call.1} parent=47 // pred_check
          %p1038 = pneg %p1037
        $region62: #{tpu_custom_call.1} parent=47 // pred_check_branch
          %1040 = sbr.rel (%p1038) target = $region64
        $region63: #{tpu_custom_call.1} parent=47 // pred_region
          %v1041 = vld [vmem:[%s6] sm:$0xf]
          %v1042 = vld [vmem:[#allocation2] sm:$0xff]
          %v1043 = vld [vmem:[#allocation2 + $0x8] sm:$0xff]
          %v1044 = vld [vmem:[#allocation2 + $0x10] sm:$0xff]
          %v1045 = vld [vmem:[#allocation2 + $0x18] sm:$0xff]
          %v1046 = vld [vmem:[#allocation2 + $0x20] sm:$0xff]
          %v1047 = vld [vmem:[#allocation2 + $0x28] sm:$0xff]
          %v1048 = vld [vmem:[#allocation2 + $0x30] sm:$0xff]
          %v1049 = vld [vmem:[#allocation2 + $0x38] sm:$0xff]
          %v1050 = vld [vmem:[#allocation2 + $0x40] sm:$0xff]
          %v1051 = vld [vmem:[#allocation2 + $0x48] sm:$0xff]
          %v1052 = vld [vmem:[#allocation2 + $0x50] sm:$0xff]
          %v1053 = vld [vmem:[#allocation2 + $0x58] sm:$0xff]
          %v1054 = vld [vmem:[#allocation2 + $0x60] sm:$0xff]
          %v1055 = vld [vmem:[#allocation2 + $0x68] sm:$0xff]
          %v1056 = vld [vmem:[#allocation2 + $0x70] sm:$0xff]
          %v1057 = vld [vmem:[#allocation2 + $0x78] sm:$0xff]
          %v1058 = vlaneseq
          %v1059 = vshrl.u32 %v1058, 7
          %v1060 = vsub.s32 0, %v1059
          %v1061 = vrot.slane %v1041, %v1060
          %v1062 = vadd.f32 %v1042, %v1061
          %v1063 = vadd.f32 %v1043, %v1061
          %v1064 = vadd.f32 %v1044, %v1061
          %v1065 = vadd.f32 %v1045, %v1061
          %v1066 = vadd.f32 %v1046, %v1061
          %v1067 = vadd.f32 %v1047, %v1061
          %v1068 = vadd.f32 %v1048, %v1061
          %v1069 = vadd.f32 %v1049, %v1061
          %v1070 = vadd.f32 %v1050, %v1061
          %v1071 = vadd.f32 %v1051, %v1061
          %v1072 = vadd.f32 %v1052, %v1061
          %v1073 = vadd.f32 %v1053, %v1061
          %v1074 = vadd.f32 %v1054, %v1061
          %v1075 = vadd.f32 %v1055, %v1061
          %v1076 = vadd.f32 %v1056, %v1061
          %v1077 = vadd.f32 %v1057, %v1061
          %v1078 = vmax.f32 %v1062, 0.0
          %v1079 = vmax.f32 %v1063, 0.0
          %v1080 = vmax.f32 %v1064, 0.0
          %v1081 = vmax.f32 %v1065, 0.0
          %v1082 = vmax.f32 %v1066, 0.0
          %v1083 = vmax.f32 %v1067, 0.0
          %v1084 = vmax.f32 %v1068, 0.0
          %v1085 = vmax.f32 %v1069, 0.0
          %v1086 = vmax.f32 %v1070, 0.0
          %v1087 = vmax.f32 %v1071, 0.0
          %v1088 = vmax.f32 %v1072, 0.0
          %v1089 = vmax.f32 %v1073, 0.0
          %v1090 = vmax.f32 %v1074, 0.0
          %v1091 = vmax.f32 %v1075, 0.0
          %v1092 = vmax.f32 %v1076, 0.0
          %v1093 = vmax.f32 %v1077, 0.0
          %v1094 = vpack.c.bf16 %v1079, %v1078
          %v1095 = vpack.c.bf16 %v1081, %v1080
          %v1096 = vpack.c.bf16 %v1083, %v1082
          %v1097 = vpack.c.bf16 %v1085, %v1084
          %v1098 = vpack.c.bf16 %v1087, %v1086
          %v1099 = vpack.c.bf16 %v1089, %v1088
          %v1100 = vpack.c.bf16 %v1091, %v1090
          %v1101 = vpack.c.bf16 %v1093, %v1092
          %v1102 = vld [vmem:[%s4] sm:$0xf]
          %v1103 = vld [vmem:[%s4 + $0x4] sm:$0xf]
          %v1104 = vld [vmem:[%s4 + $0x8] sm:$0xf]
          %v1105 = vld [vmem:[%s4 + $0xc] sm:$0xf]
          %v1106 = vlaneseq
          %v1107 = vshrl.u32 %v1106, 7
          %v1108 = vsub.s32 1, %v1107
          %v1109 = vrot.slane %v1041, %v1108
          %v1114 = vunpack.c.l.b16 %v1102
          %v1115 = vunpack.c.l.b16 %v1103
          %v1116 = vunpack.c.l.b16 %v1104
          %v1117 = vunpack.c.l.b16 %v1105
          %v1118 = vpack.c.b16 %v1115, %v1114
          %v1119 = vpack.c.b16 %v1117, %v1116
          %v1123 = vsel %vm1020, %v1094, 0
          %v1126 = vsel %vm1020, %v1095, 0
          %v1129 = vsel %vm1020, %v1096, 0
          %v1132 = vsel %vm1020, %v1097, 0
          %v1135 = vsel %vm1020, %v1098, 0
          %v1138 = vsel %vm1020, %v1099, 0
          %v1141 = vsel %vm1020, %v1100, 0
          %v1144 = vsel %vm1020, %v1101, 0
          %1146 = vmatprep.subr.bf16.mxu0 0
          %1147 = vmatpush1.bf16.msra.mxu0 %v1118
          %1148 = vmatprep.subr.bf16.mxu0 0
          %1149 = vmatpush1.bf16.msra.mxu0 %v1119
          %1150 = vmatprep.subr.bf16.mxu0 0
          %1151 = vmatpush1.bf16.msra.mxu0 0
          %1152 = vmatprep.subr.bf16.mxu0 0
          %1153 = vmatpush1.bf16.msra.mxu0 0
          %1154 = vmatprep.subr.bf16.mxu0 0
          %1155 = vmatpush1.bf16.msra.mxu0 0
          %1156 = vmatprep.subr.bf16.mxu0 0
          %1157 = vmatpush1.bf16.msra.mxu0 0
          %1158 = vmatprep.subr.bf16.mxu0 0
          %1159 = vmatpush1.bf16.msra.mxu0 0
          %1160 = vmatprep.subr.bf16.mxu0 0
          %1161 = vmatpush1.bf16.msra.mxu0 0
          %1162 = vmatprep.subr.bf16.mxu0 0
          %1163 = vmatpush1.bf16.msra.mxu0 0
          %1164 = vmatprep.subr.bf16.mxu0 0
          %1165 = vmatpush1.bf16.msra.mxu0 0
          %1166 = vmatprep.subr.bf16.mxu0 0
          %1167 = vmatpush1.bf16.msra.mxu0 0
          %1168 = vmatprep.subr.bf16.mxu0 0
          %1169 = vmatpush1.bf16.msra.mxu0 0
          %1170 = vmatprep.subr.bf16.mxu0 0
          %1171 = vmatpush1.bf16.msra.mxu0 0
          %1172 = vmatprep.subr.bf16.mxu0 0
          %1173 = vmatpush1.bf16.msra.mxu0 0
          %1174 = vmatprep.subr.bf16.mxu0 0
          %1175 = vmatpush1.bf16.msra.mxu0 0
          %1176 = vmatprep.subr.bf16.mxu0 0
          %1177 = vmatpush1.bf16.msra.mxu0 0
          %1178 = vmatprep.mubr.bf16.mxu0 0
          %1179 = vmatmul.mubr.bf16.gmra.mrb[0].mxu0 %v1123
          %v1180 = vpop.f32.mrb[0].mxu0
          %v1181 = vadd.f32 %v1109, %v1180
          %v1182 = vpop.f32.mrb[0].mxu0
          %v1183 = vpop.f32.mrb[0].mxu0
          %v1184 = vadd.f32 %v1109, %v1183
          %v1185 = vpop.f32.mrb[0].mxu0
          %1186 = vmatprep.mubr.bf16.mxu0 0
          %1187 = vmatmul.mubr.bf16.gmra.mrb[0].mxu0 %v1126
          %v1188 = vpop.f32.mrb[0].mxu0
          %v1189 = vadd.f32 %v1109, %v1188
          %v1190 = vpop.f32.mrb[0].mxu0
          %v1191 = vpop.f32.mrb[0].mxu0
          %v1192 = vadd.f32 %v1109, %v1191
          %v1193 = vpop.f32.mrb[0].mxu0
          %1194 = vmatprep.mubr.bf16.mxu0 0
          %1195 = vmatmul.mubr.bf16.gmra.mrb[0].mxu0 %v1129
          %v1196 = vpop.f32.mrb[0].mxu0
          %v1197 = vadd.f32 %v1109, %v1196
          %v1198 = vpop.f32.mrb[0].mxu0
          %v1199 = vpop.f32.mrb[0].mxu0
          %v1200 = vadd.f32 %v1109, %v1199
          %v1201 = vpop.f32.mrb[0].mxu0
          %1202 = vmatprep.mubr.bf16.mxu0 0
          %1203 = vmatmul.mubr.bf16.gmra.mrb[0].mxu0 %v1132
          %v1204 = vpop.f32.mrb[0].mxu0
          %v1205 = vadd.f32 %v1109, %v1204
          %v1206 = vpop.f32.mrb[0].mxu0
          %v1207 = vpop.f32.mrb[0].mxu0
          %v1208 = vadd.f32 %v1109, %v1207
          %v1209 = vpop.f32.mrb[0].mxu0
          %1210 = vmatprep.mubr.bf16.mxu0 0
          %1211 = vmatmul.mubr.bf16.gmra.mrb[0].mxu0 %v1135
          %v1212 = vpop.f32.mrb[0].mxu0
          %v1213 = vadd.f32 %v1109, %v1212
          %v1214 = vpop.f32.mrb[0].mxu0
          %v1215 = vpop.f32.mrb[0].mxu0
          %v1216 = vadd.f32 %v1109, %v1215
          %v1217 = vpop.f32.mrb[0].mxu0
          %1218 = vmatprep.mubr.bf16.mxu0 0
          %1219 = vmatmul.mubr.bf16.gmra.mrb[0].mxu0 %v1138
          %v1220 = vpop.f32.mrb[0].mxu0
          %v1221 = vadd.f32 %v1109, %v1220
          %v1222 = vpop.f32.mrb[0].mxu0
          %v1223 = vpop.f32.mrb[0].mxu0
          %v1224 = vadd.f32 %v1109, %v1223
          %v1225 = vpop.f32.mrb[0].mxu0
          %1226 = vmatprep.mubr.bf16.mxu0 0
          %1227 = vmatmul.mubr.bf16.gmra.mrb[0].mxu0 %v1141
          %v1228 = vpop.f32.mrb[0].mxu0
          %v1229 = vadd.f32 %v1109, %v1228
          %v1230 = vpop.f32.mrb[0].mxu0
          %v1231 = vpop.f32.mrb[0].mxu0
          %v1232 = vadd.f32 %v1109, %v1231
          %v1233 = vpop.f32.mrb[0].mxu0
          %1234 = vmatprep.mubr.bf16.mxu0 0
          %1235 = vmatmul.mubr.bf16.gmra.mrb[0].mxu0 %v1144
          %v1236 = vpop.f32.mrb[0].mxu0
          %v1237 = vadd.f32 %v1109, %v1236
          %v1238 = vpop.f32.mrb[0].mxu0
          %v1239 = vpop.f32.mrb[0].mxu0
          %v1240 = vadd.f32 %v1109, %v1239
          %v1241 = vpop.f32.mrb[0].mxu0
          %1242 = vdwg.mxu0
          %v1243 = vmax.f32 %v1181, 0.0
          %v1244 = vmax.f32 %v1184, 0.0
          %v1245 = vmax.f32 %v1189, 0.0
          %v1246 = vmax.f32 %v1192, 0.0
          %v1247 = vmax.f32 %v1197, 0.0
          %v1248 = vmax.f32 %v1200, 0.0
          %v1249 = vmax.f32 %v1205, 0.0
          %v1250 = vmax.f32 %v1208, 0.0
          %v1251 = vmax.f32 %v1213, 0.0
          %v1252 = vmax.f32 %v1216, 0.0
          %v1253 = vmax.f32 %v1221, 0.0
          %v1254 = vmax.f32 %v1224, 0.0
          %v1255 = vmax.f32 %v1229, 0.0
          %v1256 = vmax.f32 %v1232, 0.0
          %v1257 = vmax.f32 %v1237, 0.0
          %v1258 = vmax.f32 %v1240, 0.0
          %v1259 = vpack.c.bf16 %v1244, %v1243
          %v1260 = vpack.c.bf16 %v1246, %v1245
          %v1261 = vpack.c.bf16 %v1248, %v1247
          %v1262 = vpack.c.bf16 %v1250, %v1249
          %v1263 = vpack.c.bf16 %v1252, %v1251
          %v1264 = vpack.c.bf16 %v1254, %v1253
          %v1265 = vpack.c.bf16 %v1256, %v1255
          %v1266 = vpack.c.bf16 %v1258, %v1257
          %v1267 = vld [vmem:[%s5] sm:$0xf]
          %v1268 = vld [vmem:[%s5 + $0x4] sm:$0xf]
          %v1269 = vld [vmem:[%s5 + $0x8] sm:$0xf]
          %v1270 = vld [vmem:[%s5 + $0xc] sm:$0xf]
          %v1271 = vlaneseq
          %v1272 = vshrl.u32 %v1271, 7
          %v1273 = vsub.s32 2, %v1272
          %v1274 = vrot.slane %v1041, %v1273
          %v1279 = vunpack.c.l.b16 %v1267
          %v1280 = vunpack.c.l.b16 %v1268
          %v1281 = vunpack.c.l.b16 %v1269
          %v1282 = vunpack.c.l.b16 %v1270
          %v1283 = vpack.c.b16 %v1280, %v1279
          %v1284 = vpack.c.b16 %v1282, %v1281
          %v1288 = vsel %vm1020, %v1259, 0
          %v1291 = vsel %vm1020, %v1260, 0
          %v1294 = vsel %vm1020, %v1261, 0
          %v1297 = vsel %vm1020, %v1262, 0
          %v1300 = vsel %vm1020, %v1263, 0
          %v1303 = vsel %vm1020, %v1264, 0
          %v1306 = vsel %vm1020, %v1265, 0
          %v1309 = vsel %vm1020, %v1266, 0
          %1311 = vmatprep.subr.bf16.mxu0 0
          %1312 = vmatpush1.bf16.msra.mxu0 %v1283
          %1313 = vmatprep.subr.bf16.mxu0 0
          %1314 = vmatpush1.bf16.msra.mxu0 %v1284
          %1315 = vmatprep.subr.bf16.mxu0 0
          %1316 = vmatpush1.bf16.msra.mxu0 0
          %1317 = vmatprep.subr.bf16.mxu0 0
          %1318 = vmatpush1.bf16.msra.mxu0 0
          %1319 = vmatprep.subr.bf16.mxu0 0
          %1320 = vmatpush1.bf16.msra.mxu0 0
          %1321 = vmatprep.subr.bf16.mxu0 0
          %1322 = vmatpush1.bf16.msra.mxu0 0
          %1323 = vmatprep.subr.bf16.mxu0 0
          %1324 = vmatpush1.bf16.msra.mxu0 0
          %1325 = vmatprep.subr.bf16.mxu0 0
          %1326 = vmatpush1.bf16.msra.mxu0 0
          %1327 = vmatprep.subr.bf16.mxu0 0
          %1328 = vmatpush1.bf16.msra.mxu0 0
          %1329 = vmatprep.subr.bf16.mxu0 0
          %1330 = vmatpush1.bf16.msra.mxu0 0
          %1331 = vmatprep.subr.bf16.mxu0 0
          %1332 = vmatpush1.bf16.msra.mxu0 0
          %1333 = vmatprep.subr.bf16.mxu0 0
          %1334 = vmatpush1.bf16.msra.mxu0 0
          %1335 = vmatprep.subr.bf16.mxu0 0
          %1336 = vmatpush1.bf16.msra.mxu0 0
          %1337 = vmatprep.subr.bf16.mxu0 0
          %1338 = vmatpush1.bf16.msra.mxu0 0
          %1339 = vmatprep.subr.bf16.mxu0 0
          %1340 = vmatpush1.bf16.msra.mxu0 0
          %1341 = vmatprep.subr.bf16.mxu0 0
          %1342 = vmatpush1.bf16.msra.mxu0 0
          %1343 = vmatprep.mubr.bf16.mxu0 0
          %1344 = vmatmul.mubr.bf16.gmra.mrb[0].mxu0 %v1288
          %v1345 = vpop.f32.mrb[0].mxu0
          %v1346 = vadd.f32 %v1274, %v1345
          %v1347 = vpop.f32.mrb[0].mxu0
          %v1348 = vpop.f32.mrb[0].mxu0
          %v1349 = vadd.f32 %v1274, %v1348
          %v1350 = vpop.f32.mrb[0].mxu0
          %1351 = vmatprep.mubr.bf16.mxu0 0
          %1352 = vmatmul.mubr.bf16.gmra.mrb[0].mxu0 %v1291
          %v1353 = vpop.f32.mrb[0].mxu0
          %v1354 = vadd.f32 %v1274, %v1353
          %v1355 = vpop.f32.mrb[0].mxu0
          %v1356 = vpop.f32.mrb[0].mxu0
          %v1357 = vadd.f32 %v1274, %v1356
          %v1358 = vpop.f32.mrb[0].mxu0
          %1359 = vmatprep.mubr.bf16.mxu0 0
          %1360 = vmatmul.mubr.bf16.gmra.mrb[0].mxu0 %v1294
          %v1361 = vpop.f32.mrb[0].mxu0
          %v1362 = vadd.f32 %v1274, %v1361
          %v1363 = vpop.f32.mrb[0].mxu0
          %v1364 = vpop.f32.mrb[0].mxu0
          %v1365 = vadd.f32 %v1274, %v1364
          %v1366 = vpop.f32.mrb[0].mxu0
          %1367 = vmatprep.mubr.bf16.mxu0 0
          %1368 = vmatmul.mubr.bf16.gmra.mrb[0].mxu0 %v1297
          %v1369 = vpop.f32.mrb[0].mxu0
          %v1370 = vadd.f32 %v1274, %v1369
          %v1371 = vpop.f32.mrb[0].mxu0
          %v1372 = vpop.f32.mrb[0].mxu0
          %v1373 = vadd.f32 %v1274, %v1372
          %v1374 = vpop.f32.mrb[0].mxu0
          %1375 = vmatprep.mubr.bf16.mxu0 0
          %1376 = vmatmul.mubr.bf16.gmra.mrb[0].mxu0 %v1300
          %v1377 = vpop.f32.mrb[0].mxu0
          %v1378 = vadd.f32 %v1274, %v1377
          %v1379 = vpop.f32.mrb[0].mxu0
          %v1380 = vpop.f32.mrb[0].mxu0
          %v1381 = vadd.f32 %v1274, %v1380
          %v1382 = vpop.f32.mrb[0].mxu0
          %1383 = vmatprep.mubr.bf16.mxu0 0
          %1384 = vmatmul.mubr.bf16.gmra.mrb[0].mxu0 %v1303
          %v1385 = vpop.f32.mrb[0].mxu0
          %v1386 = vadd.f32 %v1274, %v1385
          %v1387 = vpop.f32.mrb[0].mxu0
          %v1388 = vpop.f32.mrb[0].mxu0
          %v1389 = vadd.f32 %v1274, %v1388
          %v1390 = vpop.f32.mrb[0].mxu0
          %1391 = vmatprep.mubr.bf16.mxu0 0
          %1392 = vmatmul.mubr.bf16.gmra.mrb[0].mxu0 %v1306
          %v1393 = vpop.f32.mrb[0].mxu0
          %v1394 = vadd.f32 %v1274, %v1393
          %v1395 = vpop.f32.mrb[0].mxu0
          %v1396 = vpop.f32.mrb[0].mxu0
          %v1397 = vadd.f32 %v1274, %v1396
          %v1398 = vpop.f32.mrb[0].mxu0
          %1399 = vmatprep.mubr.bf16.mxu0 0
          %1400 = vmatmul.mubr.bf16.gmra.mrb[0].mxu0 %v1309
          %v1401 = vpop.f32.mrb[0].mxu0
          %v1402 = vadd.f32 %v1274, %v1401
          %v1403 = vpop.f32.mrb[0].mxu0
          %v1404 = vpop.f32.mrb[0].mxu0
          %v1405 = vadd.f32 %v1274, %v1404
          %v1406 = vpop.f32.mrb[0].mxu0
          %1407 = vdwg.mxu0
          %v1408 = vpack.c.bf16 %v1349, %v1346
          %v1409 = vpack.c.bf16 %v1357, %v1354
          %v1410 = vpack.c.bf16 %v1365, %v1362
          %v1411 = vpack.c.bf16 %v1373, %v1370
          %v1412 = vpack.c.bf16 %v1381, %v1378
          %v1413 = vpack.c.bf16 %v1389, %v1386
          %v1414 = vpack.c.bf16 %v1397, %v1394
          %v1415 = vpack.c.bf16 %v1405, %v1402
          %v1424 = vunpack.c.l.b16 %v1408
          %v1425 = vunpack.c.h.b16 %v1408
          %v1426 = vunpack.c.l.b16 %v1409
          %v1427 = vunpack.c.h.b16 %v1409
          %v1428 = vunpack.c.l.b16 %v1410
          %v1429 = vunpack.c.h.b16 %v1410
          %v1430 = vunpack.c.l.b16 %v1411
          %v1431 = vunpack.c.h.b16 %v1411
          %v1432 = vunpack.c.l.b16 %v1412
          %v1433 = vunpack.c.h.b16 %v1412
          %v1434 = vunpack.c.l.b16 %v1413
          %v1435 = vunpack.c.h.b16 %v1413
          %v1436 = vunpack.c.l.b16 %v1414
          %v1437 = vunpack.c.h.b16 %v1414
          %v1438 = vunpack.c.l.b16 %v1415
          %v1439 = vunpack.c.h.b16 %v1415
          %v1440 = vpack.c.b16 %v1424, %v1424
          %v1441 = vpack.c.b16 %v1425, %v1425
          %v1442 = vpack.c.b16 %v1426, %v1426
          %v1443 = vpack.c.b16 %v1427, %v1427
          %v1444 = vpack.c.b16 %v1428, %v1428
          %v1445 = vpack.c.b16 %v1429, %v1429
          %v1446 = vpack.c.b16 %v1430, %v1430
          %v1447 = vpack.c.b16 %v1431, %v1431
          %v1448 = vpack.c.b16 %v1432, %v1432
          %v1449 = vpack.c.b16 %v1433, %v1433
          %v1450 = vpack.c.b16 %v1434, %v1434
          %v1451 = vpack.c.b16 %v1435, %v1435
          %v1452 = vpack.c.b16 %v1436, %v1436
          %v1453 = vpack.c.b16 %v1437, %v1437
          %v1454 = vpack.c.b16 %v1438, %v1438
          %v1455 = vpack.c.b16 %v1439, %v1439
          %1472 = vst [vmem:[%s372] sm:$0xf] %v1440
          %1473 = vst [vmem:[%s372 + $0x4] sm:$0xf] %v1441
          %1474 = vst [vmem:[%s372 + $0x8] sm:$0xf] %v1442
          %1475 = vst [vmem:[%s372 + $0xc] sm:$0xf] %v1443
          %1476 = vst [vmem:[%s372 + $0x10] sm:$0xf] %v1444
          %1477 = vst [vmem:[%s372 + $0x14] sm:$0xf] %v1445
          %1478 = vst [vmem:[%s372 + $0x18] sm:$0xf] %v1446
          %1479 = vst [vmem:[%s372 + $0x1c] sm:$0xf] %v1447
          %1480 = vst [vmem:[%s372 + $0x20] sm:$0xf] %v1448
          %1481 = vst [vmem:[%s372 + $0x24] sm:$0xf] %v1449
          %1482 = vst [vmem:[%s372 + $0x28] sm:$0xf] %v1450
          %1483 = vst [vmem:[%s372 + $0x2c] sm:$0xf] %v1451
          %1484 = vst [vmem:[%s372 + $0x30] sm:$0xf] %v1452
          %1485 = vst [vmem:[%s372 + $0x34] sm:$0xf] %v1453
          %1486 = vst [vmem:[%s372 + $0x38] sm:$0xf] %v1454
          %1487 = vst [vmem:[%s372 + $0x3c] sm:$0xf] %v1455
        $region64: #{tpu_custom_call.1} parent=47 // pred_fallthru
          _
        %s1488 = sand.u32 %s213, 1
        %s1489 = scalar_lea.sflag [#allocation5], %s1488
        %s1490 = sand.u32 %s213, 1
        %s1491 = smul.addr %s1490, 64
        %s1492 = scalar_lea.vmem [#allocation8], %s1491
        // Predicated region
        $region65: #{tpu_custom_call.1} parent=47 // pred_check
          %p1493 = pneg %p223
        $region66: #{tpu_custom_call.1} parent=47 // pred_check_branch
          %1495 = sbr.rel (%p1493) target = $region68
        $region67: #{tpu_custom_call.1} parent=47 // pred_region
          %s1496 = smul.u32 16, %s31
          %s1498 = ssub.s32 1024, 1024
          %1499 = vsyncadd %s1489, %s1498
          %s1500 = smul.addr %s1496, 64
          %s1501 = scalar_lea.hbm %s7, %s1500
          %s1502 = sshll.u32 %s1492, 4
          %s1503 = int_to_ptr.vmem [resolvable:$true] %s1502
          %1508 = dma.vmem_to_hbm [thread:$0]  %s1503, 1024, %s1501, %s1489, 64, 64, 4
        $region68: #{tpu_custom_call.1} parent=47 // pred_fallthru
          _
      $region48: #{tpu_custom_call.1} parent=5 // pred_fallthru
        _
      %p1509 = scmp.le.s32.totalorder 2, %s22
      // Predicated region
      $region69: #{tpu_custom_call.1} parent=5 // pred_check
        %p1510 = pneg %p1509
      $region70: #{tpu_custom_call.1} parent=5 // pred_check_branch
        %1512 = sbr.rel (%p1510) target = $region72
      $region71: #{tpu_custom_call.1} parent=5 // pred_region
        %s1513 = ssub.s32 %s22, 2
        // Predicated region
        $region73: #{tpu_custom_call.1} parent=71 // pred_check
          %p1514 = pneg %p229
        $region74: #{tpu_custom_call.1} parent=71 // pred_check_branch
          %1516 = sbr.rel (%p1514) target = $region76
        $region75: #{tpu_custom_call.1} parent=71 // pred_region
          %s1517 = sand.u32 %s214, 1
          %s1518 = scalar_lea.sflag [#allocation5], %s1517
          %s1519 = sand.u32 %s214, 1
          %s1520 = smul.addr %s1519, 64
          %s1521 = scalar_lea.vmem [#allocation8], %s1520
          %1522 = dma.done %s1518, 1024
        $region76: #{tpu_custom_call.1} parent=71 // pred_fallthru
          _
      $region72: #{tpu_custom_call.1} parent=5 // pred_fallthru
        _
    $region6: #{tpu_custom_call.1} parent=1 // loop_footer
      %s26 = sadd.s32 1, %s22
    $region7: #{tpu_custom_call.1} parent=1 // loop_footer_branch
      %21 = sbr.rel target = $region3
    $region8: #{tpu_custom_call.1} parent=1 // loop_exit
      _
    %1523 = vsyncpa [#allocation4], 1
    %s1524 = scalar_lea.sflag [#allocation4], 1
    %1525 = vsyncpa %s1524, 1
    %1526 = vsyncpa [#allocation7], 1
    %s1527 = scalar_lea.sflag [#allocation7], 1
    %1528 = vsyncpa %s1527, 1
    %1529 = vsyncpa [#allocation5], 1
    %s1530 = scalar_lea.sflag [#allocation5], 1
    %1531 = vsyncpa %s1530, 1

</llo_original>
